<compile_context>
chip_gen: v7x
topology: tpu7x:2x2x1
jax: 0.10.0
libtpu: 0.0.40
codegen_flags: <defaults>
</compile_context>

<pallas_src>
import functools

import jax
import jax.numpy as jnp
from jax.experimental import pallas as pl
from jax.experimental.pallas import tpu as pltpu

LANE = 128          # output feature dim padded to this for lane-dense stores
MAX_TILE_M = 1024   # batch-tile cap: low per-step overhead, safe VMEM on v7x


# ----------------------------------------------------------------------------
# Kernel
# ----------------------------------------------------------------------------
def _layer(x, w_ref, b_ref, *, compute_dtype, elementwise_dtype, activate):
    """y = act(x @ W + b).

    Matmul operands in `compute_dtype` (bf16 fast path) with f32 MXU
    accumulation; bias-add / tanh in `elementwise_dtype` (bf16 on v6e/v7x,
    f32 on v5e which lacks bf16 VPU/EUP)."""
    y = jnp.dot(
        x.astype(compute_dtype),
        w_ref[...],                      # weights already stored in compute_dtype
        preferred_element_type=jnp.float32,
    )
    y = y.astype(elementwise_dtype) + b_ref[...]   # biases already elementwise_dtype
    if activate:
        y = jnp.tanh(y)
    return y


def autoencoder_kernel(
    x_ref,
    w1, b1,        # 4   -> 512, tanh
    w2, b2,        # 512 -> 512, tanh
    wmid, bmid,    # folded 512 -> 3 -> 512 bottleneck, tanh
    w4, b4,        # 512 -> 512, tanh
    w5, b5,        # 512 -> 128 (zero-padded from 4), linear
    out_ref,
    *,
    compute_dtype,
    elementwise_dtype,
):
    kw = dict(compute_dtype=compute_dtype, elementwise_dtype=elementwise_dtype)
    x = x_ref[...]                                   # (tile_m, 4) f32
    h = _layer(x, w1, b1, activate=True, **kw)       # (tile_m, 512)
    h = _layer(h, w2, b2, activate=True, **kw)       # (tile_m, 512)
    h = _layer(h, wmid, bmid, activate=True, **kw)   # folded bottleneck
    h = _layer(h, w4, b4, activate=True, **kw)       # (tile_m, 512)
    y = _layer(h, w5, b5, activate=False, **kw)      # (tile_m, 128) lane-dense
    out_ref[...] = y.astype(out_ref.dtype)


# ----------------------------------------------------------------------------
# Wrapper
# ----------------------------------------------------------------------------
def _round_up(v, m):
    return ((v + m - 1) // m) * m


def _choose_tile_m(batch):
    """Pick the batch tile: as large as possible (cap MAX_TILE_M) while keeping
    grid_m >= 2 (even for big batches) so both v7x TensorCores get balanced
    work under dimension_semantics=('parallel',)."""
    b8 = _round_up(max(batch, 1), 8)
    if b8 <= 2 * MAX_TILE_M:
        # one or two tiles worth of rows: split ~evenly into (up to) two tiles
        return max(_round_up(-(-b8 // 2), 8), 8)
    grid = -(-b8 // MAX_TILE_M)
    if grid % 2:
        grid += 1                # even grid_m -> balanced across 2 TCs on v7x
    return _round_up(-(-b8 // grid), 8)


def _default_elementwise_dtype():
    """bf16 bias-add/tanh on chips with bf16 VPU/EUP (v6e, v7x); f32 on older
    generations (v5e and earlier)."""
    try:
        kind = jax.devices()[0].device_kind.lower()
    except Exception:
        return jnp.float32
    if any(g in kind for g in ("v2", "v3", "v4", "v5")):
        return jnp.float32
    return jnp.bfloat16


@functools.partial(
    jax.jit,
    static_argnames=("tile_m", "compute_dtype", "elementwise_dtype", "out_dtype"),
)
def _autoencoder_forward_impl(x, params, *, tile_m, compute_dtype,
                              elementwise_dtype, out_dtype):
    ew1, eb1, ew2, eb2, ew3, eb3, dw1, db1, dw2, db2, dw3, db3 = params
    B, F_in = x.shape
    F_out = dw3.shape[-1]  # 4

    # Fold the activation-free 512 -> 3 -> 512 bottleneck into one layer, in
    # f32 *before* any low-precision cast:
    #   tanh((h@ew3 + eb3)@dw1 + db1) == tanh(h@(ew3@dw1) + (eb3@dw1 + db1))
    w_mid = jnp.dot(ew3, dw1, preferred_element_type=jnp.float32)        # (512, 512)
    b_mid = jnp.dot(eb3, dw1, preferred_element_type=jnp.float32) + db1  # (1, 512)

    # Lane-dense output: pad the final layer's output dim (4) to 128.
    dw3_p = jnp.pad(dw3, ((0, 0), (0, LANE - F_out)))
    db3_p = jnp.pad(db3, ((0, 0), (0, LANE - F_out)))

    # Pad batch up to grid_m * tile_m (padded rows sliced off below).
    grid_m = pl.cdiv(B, tile_m)
    B_pad = grid_m * tile_m
    if B_pad != B:
        x = jnp.pad(x, ((0, B_pad - B), (0, 0)))

    cdt = jnp.dtype(compute_dtype)
    edt = jnp.dtype(elementwise_dtype)
    weights = [w.astype(cdt) for w in (ew1, ew2, w_mid, dw2, dw3_p)]
    biases = [b.astype(edt) for b in (eb1, eb2, b_mid, db2, db3_p)]
    flat_params = []
    for w, b in zip(weights, biases):
        flat_params += [w, b]

    # Whole-array, VMEM-resident blocks for weights/biases (constant index_map,
    # never re-DMA'd).  Total ~1.7 MiB bf16 -> default buffering is harmless.
    def _whole(shape):
        return pl.BlockSpec(shape, lambda i: (0,) * len(shape))

    in_specs = [pl.BlockSpec((tile_m, F_in), lambda i: (i, 0))]
    in_specs += [_whole(p.shape) for p in flat_params]
    out_spec = pl.BlockSpec((tile_m, LANE), lambda i: (i, 0))

    kernel = functools.partial(
        autoencoder_kernel, compute_dtype=cdt, elementwise_dtype=edt
    )

    out = pl.pallas_call(
        kernel,
        out_shape=jax.ShapeDtypeStruct((B_pad, LANE), jnp.dtype(out_dtype)),
        grid_spec=pltpu.PrefetchScalarGridSpec(
            num_scalar_prefetch=0,
            grid=(grid_m,),
            in_specs=in_specs,
            out_specs=out_spec,
        ),
        compiler_params=pltpu.CompilerParams(
            dimension_semantics=("parallel",),  # batch tiles shard across v7x TCs
        ),
    )(x, *flat_params)

    # Slice off batch padding + lane padding; external contract is f32 like torch.
    return out[:B, :F_out].astype(jnp.float32)


def autoencoder_forward(x, params, tile_m=None, compute_dtype=jnp.bfloat16,
                        elementwise_dtype=None):
    """x: (B, 4) float32.  params: flat tuple of (W_(in,out), b_(1,out)) pairs
    matching the six nn.Linear layers (weights pre-transposed to (in, out))."""
    if tile_m is None:
        tile_m = _choose_tile_m(x.shape[0])
    cdt = jnp.dtype(compute_dtype)
    if elementwise_dtype is None:
        # bf16 elementwise only makes sense on the bf16 fast path and on chips
        # with bf16 VPU/EUP; otherwise stay f32.
        elementwise_dtype = (
            _default_elementwise_dtype() if cdt == jnp.dtype(jnp.bfloat16)
            else jnp.float32
        )
    edt = jnp.dtype(elementwise_dtype)
    # bf16 HBM writeback on the fast path (halved padded writeback); f32 on the
    # full-precision validation path.
    out_dtype = (jnp.dtype(jnp.bfloat16) if cdt == jnp.dtype(jnp.bfloat16)
                 else jnp.dtype(jnp.float32))
    return _autoencoder_forward_impl(
        x, params, tile_m=int(tile_m), compute_dtype=cdt,
        elementwise_dtype=edt, out_dtype=out_dtype,
    )


# ----------------------------------------------------------------------------
# Init + pure-JAX reference
# ----------------------------------------------------------------------------
def init_params(key):
    """Deterministic init mimicking nn.Linear's U(-1/sqrt(fan_in), 1/sqrt(fan_in)).
    Weights returned already transposed to (in_features, out_features)."""
    layer_dims = [
        (4, 512), (512, 512), (512, 3),   # encoder
        (3, 512), (512, 512), (512, 4),   # decoder
    ]
    params = []
    for fan_in, fan_out in layer_dims:
        key, kw, kb = jax.random.split(key, 3)
        bound = 1.0 / jnp.sqrt(jnp.float32(fan_in))
        w = jax.random.uniform(
            kw, (fan_in, fan_out), jnp.float32, minval=-bound, maxval=bound
        )
        b = jax.random.uniform(
            kb, (1, fan_out), jnp.float32, minval=-bound, maxval=bound
        )
        params.append(w)
        params.append(b)
    return tuple(params)


def autoencoder_ref(x, params):
    """Pure-JAX reference (unfolded, f32) mirroring the PyTorch module."""
    ew1, eb1, ew2, eb2, ew3, eb3, dw1, db1, dw2, db2, dw3, db3 = params
    h = jnp.tanh(x @ ew1 + eb1)
    h = jnp.tanh(h @ ew2 + eb2)
    z = h @ ew3 + eb3
    h = jnp.tanh(z @ dw1 + db1)
    h = jnp.tanh(h @ dw2 + db2)
    return h @ dw3 + db3


if __name__ == "__main__":
    key = jax.random.PRNGKey(0)
    kx, kp = jax.random.split(key)

    B = 16  # small test batch (input features fixed at 4 by the module)
    x = jax.random.normal(kx, (B, 4), jnp.float32)
    params = init_params(kp)

    ref = autoencoder_ref(x, params)

    # Full-f32 path: only the bottleneck fold reorders float ops -> tight check.
    out_f32 = jax.block_until_ready(
        autoencoder_forward(x, params, compute_dtype=jnp.float32)
    )
    assert out_f32.shape == (B, 4)
    assert jnp.allclose(out_f32, ref, atol=1e-4, rtol=1e-4)

    # Default fast path: bf16 MXU operands, chip-appropriate elementwise dtype,
    # bf16 writeback -> looser tolerance for bf16 rounding.
    out_fast = jax.block_until_ready(autoencoder_forward(x, params))
    assert out_fast.shape == (B, 4)
    assert jnp.allclose(out_fast, ref, atol=1e-1, rtol=1e-1)

    print("KERNEL_OK")
</pallas_src>

<mosaic_0001>
module attributes {stable_mosaic.version = 11 : i64} {
  func.func @autoencoder_kernel(%arg0: i32, %arg1: memref<8x4xf32, #tpu.memory_space<vmem>>, %arg2: memref<4x512xf32, #tpu.memory_space<vmem>>, %arg3: memref<1x512xf32, #tpu.memory_space<vmem>>, %arg4: memref<512x512xf32, #tpu.memory_space<vmem>>, %arg5: memref<1x512xf32, #tpu.memory_space<vmem>>, %arg6: memref<512x512xf32, #tpu.memory_space<vmem>>, %arg7: memref<1x512xf32, #tpu.memory_space<vmem>>, %arg8: memref<512x512xf32, #tpu.memory_space<vmem>>, %arg9: memref<1x512xf32, #tpu.memory_space<vmem>>, %arg10: memref<512x128xf32, #tpu.memory_space<vmem>>, %arg11: memref<1x128xf32, #tpu.memory_space<vmem>>, %arg12: memref<8x128xf32, #tpu.memory_space<vmem>>) attributes {dimension_semantics = [#tpu.dimension_semantics<parallel>], iteration_bounds = array<i64: 2>, scalar_prefetch = 0 : i64, scratch_operands = 0 : i64, tpu.core_type = #tpu.core_type<tc>, window_params = [{transform_indices = @transform_0, window_bounds = array<i64: 8, 4>}, {pipeline_mode = #tpu.pipeline_mode<synchronous>, transform_indices = @transform_1, window_bounds = array<i64: 4, 512>}, {pipeline_mode = #tpu.pipeline_mode<synchronous>, transform_indices = @transform_2, window_bounds = array<i64: 1, 512>}, {pipeline_mode = #tpu.pipeline_mode<synchronous>, transform_indices = @transform_3, window_bounds = array<i64: 512, 512>}, {pipeline_mode = #tpu.pipeline_mode<synchronous>, transform_indices = @transform_4, window_bounds = array<i64: 1, 512>}, {pipeline_mode = #tpu.pipeline_mode<synchronous>, transform_indices = @transform_5, window_bounds = array<i64: 512, 512>}, {pipeline_mode = #tpu.pipeline_mode<synchronous>, transform_indices = @transform_6, window_bounds = array<i64: 1, 512>}, {pipeline_mode = #tpu.pipeline_mode<synchronous>, transform_indices = @transform_7, window_bounds = array<i64: 512, 512>}, {pipeline_mode = #tpu.pipeline_mode<synchronous>, transform_indices = @transform_8, window_bounds = array<i64: 1, 512>}, {pipeline_mode = #tpu.pipeline_mode<synchronous>, transform_indices = @transform_9, window_bounds = array<i64: 512, 128>}, {pipeline_mode = #tpu.pipeline_mode<synchronous>, transform_indices = @transform_10, window_bounds = array<i64: 1, 128>}, {transform_indices = @transform_11, window_bounds = array<i64: 8, 128>}]} {
    %c0 = arith.constant 0 : index
    %c0_0 = arith.constant 0 : index
    %0 = vector.load %arg1[%c0, %c0_0] : memref<8x4xf32, #tpu.memory_space<vmem>>, vector<8x4xf32>
    %c0_1 = arith.constant 0 : index
    %c0_2 = arith.constant 0 : index
    %1 = vector.load %arg2[%c0_1, %c0_2] : memref<4x512xf32, #tpu.memory_space<vmem>>, vector<4x512xf32>
    %cst = arith.constant dense<0.000000e+00> : vector<8x512xf32>
    %2 = tpu.matmul %0, %1, %cst {dimension_numbers = #tpu.dot_dimension_numbers<[1], [0], [0], [1], [0, 0, 1, 1], [], []>} : vector<8x4xf32>, vector<4x512xf32>, vector<8x512xf32> -> vector<8x512xf32>
    %c0_3 = arith.constant 0 : index
    %c0_4 = arith.constant 0 : index
    %3 = vector.load %arg3[%c0_3, %c0_4] : memref<1x512xf32, #tpu.memory_space<vmem>>, vector<1x512xf32>
    %4 = vector.broadcast %3 : vector<1x512xf32> to vector<8x512xf32>
    %5 = arith.addf %2, %4 : vector<8x512xf32>
    %6 = math.tanh %5 : vector<8x512xf32>
    %c0_5 = arith.constant 0 : index
    %c0_6 = arith.constant 0 : index
    %7 = vector.load %arg4[%c0_5, %c0_6] : memref<512x512xf32, #tpu.memory_space<vmem>>, vector<512x512xf32>
    %cst_7 = arith.constant dense<0.000000e+00> : vector<8x512xf32>
    %8 = tpu.matmul %6, %7, %cst_7 {dimension_numbers = #tpu.dot_dimension_numbers<[1], [0], [0], [1], [0, 0, 1, 1], [], []>} : vector<8x512xf32>, vector<512x512xf32>, vector<8x512xf32> -> vector<8x512xf32>
    %c0_8 = arith.constant 0 : index
    %c0_9 = arith.constant 0 : index
    %9 = vector.load %arg5[%c0_8, %c0_9] : memref<1x512xf32, #tpu.memory_space<vmem>>, vector<1x512xf32>
    %10 = vector.broadcast %9 : vector<1x512xf32> to vector<8x512xf32>
    %11 = arith.addf %8, %10 : vector<8x512xf32>
    %12 = math.tanh %11 : vector<8x512xf32>
    %c0_10 = arith.constant 0 : index
    %c0_11 = arith.constant 0 : index
    %13 = vector.load %arg6[%c0_10, %c0_11] : memref<512x512xf32, #tpu.memory_space<vmem>>, vector<512x512xf32>
    %cst_12 = arith.constant dense<0.000000e+00> : vector<8x512xf32>
    %14 = tpu.matmul %12, %13, %cst_12 {dimension_numbers = #tpu.dot_dimension_numbers<[1], [0], [0], [1], [0, 0, 1, 1], [], []>} : vector<8x512xf32>, vector<512x512xf32>, vector<8x512xf32> -> vector<8x512xf32>
    %c0_13 = arith.constant 0 : index
    %c0_14 = arith.constant 0 : index
    %15 = vector.load %arg7[%c0_13, %c0_14] : memref<1x512xf32, #tpu.memory_space<vmem>>, vector<1x512xf32>
    %16 = vector.broadcast %15 : vector<1x512xf32> to vector<8x512xf32>
    %17 = arith.addf %14, %16 : vector<8x512xf32>
    %18 = math.tanh %17 : vector<8x512xf32>
    %c0_15 = arith.constant 0 : index
    %c0_16 = arith.constant 0 : index
    %19 = vector.load %arg8[%c0_15, %c0_16] : memref<512x512xf32, #tpu.memory_space<vmem>>, vector<512x512xf32>
    %cst_17 = arith.constant dense<0.000000e+00> : vector<8x512xf32>
    %20 = tpu.matmul %18, %19, %cst_17 {dimension_numbers = #tpu.dot_dimension_numbers<[1], [0], [0], [1], [0, 0, 1, 1], [], []>} : vector<8x512xf32>, vector<512x512xf32>, vector<8x512xf32> -> vector<8x512xf32>
    %c0_18 = arith.constant 0 : index
    %c0_19 = arith.constant 0 : index
    %21 = vector.load %arg9[%c0_18, %c0_19] : memref<1x512xf32, #tpu.memory_space<vmem>>, vector<1x512xf32>
    %22 = vector.broadcast %21 : vector<1x512xf32> to vector<8x512xf32>
    %23 = arith.addf %20, %22 : vector<8x512xf32>
    %24 = math.tanh %23 : vector<8x512xf32>
    %c0_20 = arith.constant 0 : index
    %c0_21 = arith.constant 0 : index
    %25 = vector.load %arg10[%c0_20, %c0_21] : memref<512x128xf32, #tpu.memory_space<vmem>>, vector<512x128xf32>
    %cst_22 = arith.constant dense<0.000000e+00> : vector<8x128xf32>
    %26 = tpu.matmul %24, %25, %cst_22 {dimension_numbers = #tpu.dot_dimension_numbers<[1], [0], [0], [1], [0, 0, 1, 1], [], []>} : vector<8x512xf32>, vector<512x128xf32>, vector<8x128xf32> -> vector<8x128xf32>
    %c0_23 = arith.constant 0 : index
    %c0_24 = arith.constant 0 : index
    %27 = vector.load %arg11[%c0_23, %c0_24] : memref<1x128xf32, #tpu.memory_space<vmem>>, vector<1x128xf32>
    %28 = vector.broadcast %27 : vector<1x128xf32> to vector<8x128xf32>
    %29 = arith.addf %26, %28 : vector<8x128xf32>
    %c0_25 = arith.constant 0 : index
    %c0_26 = arith.constant 0 : index
    %30 = vector.load %arg12[%c0_25, %c0_26] : memref<8x128xf32, #tpu.memory_space<vmem>>, vector<8x128xf32>
    tpu.vector_store %arg12[%c0_25, %c0_26], %29 {strides = array<i32>} : memref<8x128xf32, #tpu.memory_space<vmem>>, vector<8x128xf32>,
    return
  }
  func.func @transform_0(%arg0: i32) -> (i32, i32) {
    %c0_i32 = arith.constant 0 : i32
    %c0_i32_0 = arith.constant 0 : i32
    return %arg0, %c0_i32 : i32, i32
  }
  func.func @transform_1(%arg0: i32) -> (i32, i32) {
    %c0_i32 = arith.constant 0 : i32
    %c0_i32_0 = arith.constant 0 : i32
    %c0_i32_1 = arith.constant 0 : i32
    return %c0_i32, %c0_i32_0 : i32, i32
  }
  func.func @transform_2(%arg0: i32) -> (i32, i32) {
    %c0_i32 = arith.constant 0 : i32
    %c0_i32_0 = arith.constant 0 : i32
    %c0_i32_1 = arith.constant 0 : i32
    return %c0_i32, %c0_i32_0 : i32, i32
  }
  func.func @transform_3(%arg0: i32) -> (i32, i32) {
    %c0_i32 = arith.constant 0 : i32
    %c0_i32_0 = arith.constant 0 : i32
    %c0_i32_1 = arith.constant 0 : i32
    return %c0_i32, %c0_i32_0 : i32, i32
  }
  func.func @transform_4(%arg0: i32) -> (i32, i32) {
    %c0_i32 = arith.constant 0 : i32
    %c0_i32_0 = arith.constant 0 : i32
    %c0_i32_1 = arith.constant 0 : i32
    return %c0_i32, %c0_i32_0 : i32, i32
  }
  func.func @transform_5(%arg0: i32) -> (i32, i32) {
    %c0_i32 = arith.constant 0 : i32
    %c0_i32_0 = arith.constant 0 : i32
    %c0_i32_1 = arith.constant 0 : i32
    return %c0_i32, %c0_i32_0 : i32, i32
  }
  func.func @transform_6(%arg0: i32) -> (i32, i32) {
    %c0_i32 = arith.constant 0 : i32
    %c0_i32_0 = arith.constant 0 : i32
    %c0_i32_1 = arith.constant 0 : i32
    return %c0_i32, %c0_i32_0 : i32, i32
  }
  func.func @transform_7(%arg0: i32) -> (i32, i32) {
    %c0_i32 = arith.constant 0 : i32
    %c0_i32_0 = arith.constant 0 : i32
    %c0_i32_1 = arith.constant 0 : i32
    return %c0_i32, %c0_i32_0 : i32, i32
  }
  func.func @transform_8(%arg0: i32) -> (i32, i32) {
    %c0_i32 = arith.constant 0 : i32
    %c0_i32_0 = arith.constant 0 : i32
    %c0_i32_1 = arith.constant 0 : i32
    return %c0_i32, %c0_i32_0 : i32, i32
  }
  func.func @transform_9(%arg0: i32) -> (i32, i32) {
    %c0_i32 = arith.constant 0 : i32
    %c0_i32_0 = arith.constant 0 : i32
    %c0_i32_1 = arith.constant 0 : i32
    return %c0_i32, %c0_i32_0 : i32, i32
  }
  func.func @transform_10(%arg0: i32) -> (i32, i32) {
    %c0_i32 = arith.constant 0 : i32
    %c0_i32_0 = arith.constant 0 : i32
    %c0_i32_1 = arith.constant 0 : i32
    return %c0_i32, %c0_i32_0 : i32, i32
  }
  func.func @transform_11(%arg0: i32) -> (i32, i32) {
    %c0_i32 = arith.constant 0 : i32
    %c0_i32_0 = arith.constant 0 : i32
    return %arg0, %c0_i32 : i32, i32
  }
}

</mosaic_0001>

<llo_original>
// kernel: _autoencoder_forward_impl.1
$region0: #{_autoencoder_forward_impl.1}
  #allocation0 [shape = 'u32[]', space=smem, size = 0x4, offset = 0x4, fixed_abs, tag = 'smem constant byte address 0x4 - core index']
  #allocation1 [shape = 'u32[144,128]{1,0:T(1,128)}', space=vmem, size = 0x12000, scoped, tag = 'internal scratch']
  %s0 = inlined_call_operand.vmem [shape: f32[16,4], index: 0, kind: input, shape index: {}]
  %s1 = inlined_call_operand.vmem [shape: f32[4,512], index: 1, kind: input, shape index: {}]
  %s2 = inlined_call_operand.vmem [shape: f32[1,512], index: 2, kind: input, shape index: {}]
  %s3 = inlined_call_operand.vmem [shape: f32[512,512], index: 3, kind: input, shape index: {}]
  %s4 = inlined_call_operand.vmem [shape: f32[1,512], index: 4, kind: input, shape index: {}]
  %s5 = inlined_call_operand.vmem [shape: f32[512,512], index: 5, kind: input, shape index: {}]
  %s6 = inlined_call_operand.vmem [shape: f32[1,512], index: 6, kind: input, shape index: {}]
  %s7 = inlined_call_operand.hbm [shape: f32[512,512], index: 7, kind: input, shape index: {}]
  %s8 = inlined_call_operand.vmem [shape: f32[1,512], index: 8, kind: input, shape index: {}]
  %s9 = inlined_call_operand.vmem [shape: f32[512,128], index: 9, kind: input, shape index: {}]
  %s10 = inlined_call_operand.vmem [shape: f32[1,128], index: 10, kind: input, shape index: {}]
  %s11 = inlined_call_operand.vmem [shape: f32[16,128], index: 11, kind: output, shape index: {}]
  %s12 = sld [smem:[#allocation0]]
  $region81: #{_autoencoder_forward_impl.1} parent=0
    _
  %s14 = ssub.s32 1, %s12
  %s15 = scalar_select 0, %s14, %s12
  $region1: #{_autoencoder_forward_impl.1} parent=0
    #allocation2 [shape = 'u8[1048576]{0}', space=vmem, size = 0x100000, scoped, tag = 'input window, operand 7, single buffered']
    #allocation3 [shape = 's32[2]{0}', space=sflag, size = 0x8, scoped, tag = 'scoped memory for _autoencoder_forward_impl.1']
    %16 = vsyncpa [#allocation3], 0
    loop: start=0, step=1, limit=4
    $region2: #{_autoencoder_forward_impl.1} parent=1 // loop_pre_header
      _
    $region3: #{_autoencoder_forward_impl.1} parent=1 // loop_header
      %s18 = sphi 0, %s22
      %p19 = scmp.ge.s32.totalorder %s18, 4
      %s28 = sphi 0, %s30
      %s31 = sphi 0, %s28
      %s32 = sphi 0, %s31
      %s48 = sphi 0, %s32
      %s52 = sphi 0, %s52
      %s54 = sphi 0, %s52
      %s55 = sphi 0, %s54
      %s69 = sphi 0, %s55
      %s73 = sphi 0, %s73
      %s75 = sphi 0, %s73
      %s76 = sphi 0, %s75
      %s90 = sphi 0, %s76
      %s94 = sphi 0, %s94
      %s96 = sphi 0, %s94
      %s97 = sphi 0, %s96
      %s111 = sphi 0, %s97
      %s115 = sphi 0, %s115
      %s117 = sphi 0, %s115
      %s118 = sphi 0, %s117
      %s132 = sphi 0, %s118
      %s136 = sphi 0, %s136
      %s138 = sphi 0, %s136
      %s139 = sphi 0, %s138
      %s153 = sphi 0, %s139
      %s157 = sphi 0, %s157
      %s159 = sphi 0, %s157
      %s160 = sphi 0, %s159
      %s174 = sphi 0, %s160
      %s178 = sphi 0, %s178
      %s180 = sphi 0, %s178
      %s181 = sphi 0, %s180
      %s195 = sphi 0, %s181
      %s199 = sphi 0, %s199
      %s201 = sphi 0, %s199
      %s202 = sphi 0, %s201
      %s216 = sphi 0, %s202
      %s220 = sphi 0, %s220
      %s222 = sphi 0, %s220
      %s223 = sphi 0, %s222
      %s237 = sphi 0, %s223
      %s241 = sphi 0, %s241
      %s243 = sphi 0, %s241
      %s244 = sphi 0, %s243
      %s258 = sphi 0, %s244
      %s264 = sphi 0, %s266
      %s267 = sphi 0, %s264
      %s268 = sphi 0, %s267
      %s284 = sphi 0, %s268
    $region4: #{_autoencoder_forward_impl.1} parent=1 // loop_header_branch
      %21 = sbr.rel (%p19) target = $region8
    $region5: #{_autoencoder_forward_impl.1} parent=1 // loop_body
      %s23 = ssub.s32 %s18, 1
      %s24 = ssub.s32 %s18, 2
      %s25 = sadd.s32 %s18, 1
      %s26 = ssub.s32 %s18, %s25
      %p27 = scmp.eq.s32.totalorder %s26, 0
      %s29 = sadd.s32 %s28, 1
      %s30 = scalar_select %p27, %s28, %s29
      %p33 = pneg %p27
      %p34 = scmp.eq.s32.totalorder %s18, 1
      %p35 = por %p33, %p34
      %p36 = scmp.ne.s32.totalorder %s28, %s31
      %p37 = scmp.eq.s32.totalorder %s18, 0
      %p38 = por %p36, %p37
      %p39 = scmp.ne.s32.totalorder %s28, %s31
      %p40 = scmp.eq.s32.totalorder %s23, 1
      %p41 = por %p39, %p40
      %p42 = scmp.ne.s32.totalorder %s31, %s32
      %p43 = scmp.eq.s32.totalorder %s23, 0
      %p44 = por %p42, %p43
      %p45 = scmp.ne.s32.totalorder %s31, %s32
      %p46 = scmp.eq.s32.totalorder %s24, 1
      %p47 = por %p45, %p46
      %p49 = scmp.ne.s32.totalorder %s32, %s48
      %p50 = scmp.eq.s32.totalorder %s24, 0
      %p51 = por %p49, %p50
      %s53 = sadd.s32 %s52, 1
      %p56 = scmp.eq.s32.totalorder %s18, 1
      %p57 = scmp.ne.s32.totalorder %s52, %s54
      %p58 = scmp.eq.s32.totalorder %s18, 0
      %p59 = por %p57, %p58
      %p60 = scmp.ne.s32.totalorder %s52, %s54
      %p61 = scmp.eq.s32.totalorder %s23, 1
      %p62 = por %p60, %p61
      %p63 = scmp.ne.s32.totalorder %s54, %s55
      %p64 = scmp.eq.s32.totalorder %s23, 0
      %p65 = por %p63, %p64
      %p66 = scmp.ne.s32.totalorder %s54, %s55
      %p67 = scmp.eq.s32.totalorder %s24, 1
      %p68 = por %p66, %p67
      %p70 = scmp.ne.s32.totalorder %s55, %s69
      %p71 = scmp.eq.s32.totalorder %s24, 0
      %p72 = por %p70, %p71
      %s74 = sadd.s32 %s73, 1
      %p77 = scmp.eq.s32.totalorder %s18, 1
      %p78 = scmp.ne.s32.totalorder %s73, %s75
      %p79 = scmp.eq.s32.totalorder %s18, 0
      %p80 = por %p78, %p79
      %p81 = scmp.ne.s32.totalorder %s73, %s75
      %p82 = scmp.eq.s32.totalorder %s23, 1
      %p83 = por %p81, %p82
      %p84 = scmp.ne.s32.totalorder %s75, %s76
      %p85 = scmp.eq.s32.totalorder %s23, 0
      %p86 = por %p84, %p85
      %p87 = scmp.ne.s32.totalorder %s75, %s76
      %p88 = scmp.eq.s32.totalorder %s24, 1
      %p89 = por %p87, %p88
      %p91 = scmp.ne.s32.totalorder %s76, %s90
      %p92 = scmp.eq.s32.totalorder %s24, 0
      %p93 = por %p91, %p92
      %s95 = sadd.s32 %s94, 1
      %p98 = scmp.eq.s32.totalorder %s18, 1
      %p99 = scmp.ne.s32.totalorder %s94, %s96
      %p100 = scmp.eq.s32.totalorder %s18, 0
      %p101 = por %p99, %p100
      %p102 = scmp.ne.s32.totalorder %s94, %s96
      %p103 = scmp.eq.s32.totalorder %s23, 1
      %p104 = por %p102, %p103
      %p105 = scmp.ne.s32.totalorder %s96, %s97
      %p106 = scmp.eq.s32.totalorder %s23, 0
      %p107 = por %p105, %p106
      %p108 = scmp.ne.s32.totalorder %s96, %s97
      %p109 = scmp.eq.s32.totalorder %s24, 1
      %p110 = por %p108, %p109
      %p112 = scmp.ne.s32.totalorder %s97, %s111
      %p113 = scmp.eq.s32.totalorder %s24, 0
      %p114 = por %p112, %p113
      %s116 = sadd.s32 %s115, 1
      %p119 = scmp.eq.s32.totalorder %s18, 1
      %p120 = scmp.ne.s32.totalorder %s115, %s117
      %p121 = scmp.eq.s32.totalorder %s18, 0
      %p122 = por %p120, %p121
      %p123 = scmp.ne.s32.totalorder %s115, %s117
      %p124 = scmp.eq.s32.totalorder %s23, 1
      %p125 = por %p123, %p124
      %p126 = scmp.ne.s32.totalorder %s117, %s118
      %p127 = scmp.eq.s32.totalorder %s23, 0
      %p128 = por %p126, %p127
      %p129 = scmp.ne.s32.totalorder %s117, %s118
      %p130 = scmp.eq.s32.totalorder %s24, 1
      %p131 = por %p129, %p130
      %p133 = scmp.ne.s32.totalorder %s118, %s132
      %p134 = scmp.eq.s32.totalorder %s24, 0
      %p135 = por %p133, %p134
      %s137 = sadd.s32 %s136, 1
      %p140 = scmp.eq.s32.totalorder %s18, 1
      %p141 = scmp.ne.s32.totalorder %s136, %s138
      %p142 = scmp.eq.s32.totalorder %s18, 0
      %p143 = por %p141, %p142
      %p144 = scmp.ne.s32.totalorder %s136, %s138
      %p145 = scmp.eq.s32.totalorder %s23, 1
      %p146 = por %p144, %p145
      %p147 = scmp.ne.s32.totalorder %s138, %s139
      %p148 = scmp.eq.s32.totalorder %s23, 0
      %p149 = por %p147, %p148
      %p150 = scmp.ne.s32.totalorder %s138, %s139
      %p151 = scmp.eq.s32.totalorder %s24, 1
      %p152 = por %p150, %p151
      %p154 = scmp.ne.s32.totalorder %s139, %s153
      %p155 = scmp.eq.s32.totalorder %s24, 0
      %p156 = por %p154, %p155
      %s158 = sadd.s32 %s157, 1
      %p161 = scmp.eq.s32.totalorder %s18, 1
      %p162 = scmp.ne.s32.totalorder %s157, %s159
      %p163 = scmp.eq.s32.totalorder %s18, 0
      %p164 = por %p162, %p163
      %p165 = scmp.ne.s32.totalorder %s157, %s159
      %p166 = scmp.eq.s32.totalorder %s23, 1
      %p167 = por %p165, %p166
      %p168 = scmp.ne.s32.totalorder %s159, %s160
      %p169 = scmp.eq.s32.totalorder %s23, 0
      %p170 = por %p168, %p169
      %p171 = scmp.ne.s32.totalorder %s159, %s160
      %p172 = scmp.eq.s32.totalorder %s24, 1
      %p173 = por %p171, %p172
      %p175 = scmp.ne.s32.totalorder %s160, %s174
      %p176 = scmp.eq.s32.totalorder %s24, 0
      %p177 = por %p175, %p176
      %s179 = sadd.s32 %s178, 1
      %p182 = scmp.eq.s32.totalorder %s18, 1
      %p183 = scmp.ne.s32.totalorder %s178, %s180
      %p184 = scmp.eq.s32.totalorder %s18, 0
      %p185 = por %p183, %p184
      %p186 = scmp.ne.s32.totalorder %s178, %s180
      %p187 = scmp.eq.s32.totalorder %s23, 1
      %p188 = por %p186, %p187
      %p189 = scmp.ne.s32.totalorder %s180, %s181
      %p190 = scmp.eq.s32.totalorder %s23, 0
      %p191 = por %p189, %p190
      %p192 = scmp.ne.s32.totalorder %s180, %s181
      %p193 = scmp.eq.s32.totalorder %s24, 1
      %p194 = por %p192, %p193
      %p196 = scmp.ne.s32.totalorder %s181, %s195
      %p197 = scmp.eq.s32.totalorder %s24, 0
      %p198 = por %p196, %p197
      %s200 = sadd.s32 %s199, 1
      %p203 = scmp.eq.s32.totalorder %s18, 1
      %p204 = scmp.ne.s32.totalorder %s199, %s201
      %p205 = scmp.eq.s32.totalorder %s18, 0
      %p206 = por %p204, %p205
      %p207 = scmp.ne.s32.totalorder %s199, %s201
      %p208 = scmp.eq.s32.totalorder %s23, 1
      %p209 = por %p207, %p208
      %p210 = scmp.ne.s32.totalorder %s201, %s202
      %p211 = scmp.eq.s32.totalorder %s23, 0
      %p212 = por %p210, %p211
      %p213 = scmp.ne.s32.totalorder %s201, %s202
      %p214 = scmp.eq.s32.totalorder %s24, 1
      %p215 = por %p213, %p214
      %p217 = scmp.ne.s32.totalorder %s202, %s216
      %p218 = scmp.eq.s32.totalorder %s24, 0
      %p219 = por %p217, %p218
      %s221 = sadd.s32 %s220, 1
      %p224 = scmp.eq.s32.totalorder %s18, 1
      %p225 = scmp.ne.s32.totalorder %s220, %s222
      %p226 = scmp.eq.s32.totalorder %s18, 0
      %p227 = por %p225, %p226
      %p228 = scmp.ne.s32.totalorder %s220, %s222
      %p229 = scmp.eq.s32.totalorder %s23, 1
      %p230 = por %p228, %p229
      %p231 = scmp.ne.s32.totalorder %s222, %s223
      %p232 = scmp.eq.s32.totalorder %s23, 0
      %p233 = por %p231, %p232
      %p234 = scmp.ne.s32.totalorder %s222, %s223
      %p235 = scmp.eq.s32.totalorder %s24, 1
      %p236 = por %p234, %p235
      %p238 = scmp.ne.s32.totalorder %s223, %s237
      %p239 = scmp.eq.s32.totalorder %s24, 0
      %p240 = por %p238, %p239
      %s242 = sadd.s32 %s241, 1
      %p245 = scmp.eq.s32.totalorder %s18, 1
      %p246 = scmp.ne.s32.totalorder %s241, %s243
      %p247 = scmp.eq.s32.totalorder %s18, 0
      %p248 = por %p246, %p247
      %p249 = scmp.ne.s32.totalorder %s241, %s243
      %p250 = scmp.eq.s32.totalorder %s23, 1
      %p251 = por %p249, %p250
      %p252 = scmp.ne.s32.totalorder %s243, %s244
      %p253 = scmp.eq.s32.totalorder %s23, 0
      %p254 = por %p252, %p253
      %p255 = scmp.ne.s32.totalorder %s243, %s244
      %p256 = scmp.eq.s32.totalorder %s24, 1
      %p257 = por %p255, %p256
      %p259 = scmp.ne.s32.totalorder %s244, %s258
      %p260 = scmp.eq.s32.totalorder %s24, 0
      %p261 = por %p259, %p260
      %s262 = ssub.s32 %s18, %s25
      %p263 = scmp.eq.s32.totalorder %s262, 0
      %s265 = sadd.s32 %s264, 1
      %s266 = scalar_select %p263, %s264, %s265
      %p269 = pneg %p263
      %p270 = scmp.eq.s32.totalorder %s18, 1
      %p271 = por %p269, %p270
      %p272 = scmp.ne.s32.totalorder %s264, %s267
      %p273 = scmp.eq.s32.totalorder %s18, 0
      %p274 = por %p272, %p273
      %p275 = scmp.ne.s32.totalorder %s264, %s267
      %p276 = scmp.eq.s32.totalorder %s23, 1
      %p277 = por %p275, %p276
      %p278 = scmp.ne.s32.totalorder %s267, %s268
      %p279 = scmp.eq.s32.totalorder %s23, 0
      %p280 = por %p278, %p279
      %p281 = scmp.ne.s32.totalorder %s267, %s268
      %p282 = scmp.eq.s32.totalorder %s24, 1
      %p283 = por %p281, %p282
      %p285 = scmp.ne.s32.totalorder %s268, %s284
      %p286 = scmp.eq.s32.totalorder %s24, 0
      %p287 = por %p285, %p286
      %p288 = scmp.le.s32.totalorder 1, %s18
      %p289 = scmp.lt.s32.totalorder %s18, 3
      %p290 = pnand %p288, %p289
      %p291 = pneg %p290
      // Predicated region
      $region9: #{_autoencoder_forward_impl.1} parent=5 // pred_check
        _
      $region10: #{_autoencoder_forward_impl.1} parent=5 // pred_check_branch
        %293 = sbr.rel (%p290) target = $region12
      $region11: #{_autoencoder_forward_impl.1} parent=5 // pred_region
        %s294 = ssub.s32 %s18, 1
        // Predicated region
        $region13: #{_autoencoder_forward_impl.1} parent=11 // pred_check
          %p295 = pneg %p65
        $region14: #{_autoencoder_forward_impl.1} parent=11 // pred_check_branch
          %297 = sbr.rel (%p295) target = $region16
        $region15: #{_autoencoder_forward_impl.1} parent=11 // pred_region
          _
        $region16: #{_autoencoder_forward_impl.1} parent=11 // pred_fallthru
          _
        // Predicated region
        $region17: #{_autoencoder_forward_impl.1} parent=11 // pred_check
          %p298 = pneg %p86
        $region18: #{_autoencoder_forward_impl.1} parent=11 // pred_check_branch
          %300 = sbr.rel (%p298) target = $region20
        $region19: #{_autoencoder_forward_impl.1} parent=11 // pred_region
          _
        $region20: #{_autoencoder_forward_impl.1} parent=11 // pred_fallthru
          _
        // Predicated region
        $region21: #{_autoencoder_forward_impl.1} parent=11 // pred_check
          %p301 = pneg %p107
        $region22: #{_autoencoder_forward_impl.1} parent=11 // pred_check_branch
          %303 = sbr.rel (%p301) target = $region24
        $region23: #{_autoencoder_forward_impl.1} parent=11 // pred_region
          _
        $region24: #{_autoencoder_forward_impl.1} parent=11 // pred_fallthru
          _
        // Predicated region
        $region25: #{_autoencoder_forward_impl.1} parent=11 // pred_check
          %p304 = pneg %p128
        $region26: #{_autoencoder_forward_impl.1} parent=11 // pred_check_branch
          %306 = sbr.rel (%p304) target = $region28
        $region27: #{_autoencoder_forward_impl.1} parent=11 // pred_region
          _
        $region28: #{_autoencoder_forward_impl.1} parent=11 // pred_fallthru
          _
        // Predicated region
        $region29: #{_autoencoder_forward_impl.1} parent=11 // pred_check
          %p307 = pneg %p149
        $region30: #{_autoencoder_forward_impl.1} parent=11 // pred_check_branch
          %309 = sbr.rel (%p307) target = $region32
        $region31: #{_autoencoder_forward_impl.1} parent=11 // pred_region
          _
        $region32: #{_autoencoder_forward_impl.1} parent=11 // pred_fallthru
          _
        // Predicated region
        $region33: #{_autoencoder_forward_impl.1} parent=11 // pred_check
          %p310 = pneg %p170
        $region34: #{_autoencoder_forward_impl.1} parent=11 // pred_check_branch
          %312 = sbr.rel (%p310) target = $region36
        $region35: #{_autoencoder_forward_impl.1} parent=11 // pred_region
          _
        $region36: #{_autoencoder_forward_impl.1} parent=11 // pred_fallthru
          _
        // Predicated region
        $region37: #{_autoencoder_forward_impl.1} parent=11 // pred_check
          %p313 = pneg %p191
        $region38: #{_autoencoder_forward_impl.1} parent=11 // pred_check_branch
          %315 = sbr.rel (%p313) target = $region40
        $region39: #{_autoencoder_forward_impl.1} parent=11 // pred_region
          %s317 = ssub.s32 32768, 32768
          %318 = vsyncadd [#allocation3], %s317
          %s319 = sshll.u32 [#allocation2], 4
          %s320 = int_to_ptr.vmem [resolvable:$true] %s319
          %325 = dma.hbm_to_vmem [thread:$0]  %s7, 32768, %s320, [#allocation3], 512, 512, 32
        $region40: #{_autoencoder_forward_impl.1} parent=11 // pred_fallthru
          _
        // Predicated region
        $region41: #{_autoencoder_forward_impl.1} parent=11 // pred_check
          %p326 = pneg %p212
        $region42: #{_autoencoder_forward_impl.1} parent=11 // pred_check_branch
          %328 = sbr.rel (%p326) target = $region44
        $region43: #{_autoencoder_forward_impl.1} parent=11 // pred_region
          _
        $region44: #{_autoencoder_forward_impl.1} parent=11 // pred_fallthru
          _
        // Predicated region
        $region45: #{_autoencoder_forward_impl.1} parent=11 // pred_check
          %p329 = pneg %p233
        $region46: #{_autoencoder_forward_impl.1} parent=11 // pred_check_branch
          %331 = sbr.rel (%p329) target = $region48
        $region47: #{_autoencoder_forward_impl.1} parent=11 // pred_region
          _
        $region48: #{_autoencoder_forward_impl.1} parent=11 // pred_fallthru
          _
        // Predicated region
        $region49: #{_autoencoder_forward_impl.1} parent=11 // pred_check
          %p332 = pneg %p254
        $region50: #{_autoencoder_forward_impl.1} parent=11 // pred_check_branch
          %334 = sbr.rel (%p332) target = $region52
        $region51: #{_autoencoder_forward_impl.1} parent=11 // pred_region
          _
        $region52: #{_autoencoder_forward_impl.1} parent=11 // pred_fallthru
          _
      $region12: #{_autoencoder_forward_impl.1} parent=5 // pred_fallthru
        _
      %p335 = scmp.lt.s32.totalorder %s18, 2
      // Predicated region
      $region53: #{_autoencoder_forward_impl.1} parent=5 // pred_check
        %p336 = pneg %p335
      $region54: #{_autoencoder_forward_impl.1} parent=5 // pred_check_branch
        %338 = sbr.rel (%p336) target = $region56
      $region55: #{_autoencoder_forward_impl.1} parent=5 // pred_region
        // Predicated region
        $region57: #{_autoencoder_forward_impl.1} parent=55 // pred_check
          %p339 = pneg %p38
        $region58: #{_autoencoder_forward_impl.1} parent=55 // pred_check_branch
          %341 = sbr.rel (%p339) target = $region60
        $region59: #{_autoencoder_forward_impl.1} parent=55 // pred_region
          %p342 = scmp.lt.s32.totalorder %s18, 1
          %s343 = scalar_select %p342, %s18, 1
          %s344 = smul.addr %s343, 8
          %s345 = scalar_lea.vmem %s0, %s344
        $region60: #{_autoencoder_forward_impl.1} parent=55 // pred_fallthru
          _
      $region56: #{_autoencoder_forward_impl.1} parent=5 // pred_fallthru
        _
      %p346 = scmp.le.s32.totalorder 1, %s18
      %p347 = scmp.lt.s32.totalorder %s18, 3
      %p348 = pnand %p346, %p347
      %p349 = pneg %p348
      // Predicated region
      $region61: #{_autoencoder_forward_impl.1} parent=5 // pred_check
        _
      $region62: #{_autoencoder_forward_impl.1} parent=5 // pred_check_branch
        %351 = sbr.rel (%p348) target = $region64
      $region63: #{_autoencoder_forward_impl.1} parent=5 // pred_region
        %s352 = ssub.s32 %s18, 1
        // Predicated region
        $region65: #{_autoencoder_forward_impl.1} parent=63 // pred_check
          %p353 = pneg %p191
        $region66: #{_autoencoder_forward_impl.1} parent=63 // pred_check_branch
          %355 = sbr.rel (%p353) target = $region68
        $region67: #{_autoencoder_forward_impl.1} parent=63 // pred_region
          %356 = dma.done [#allocation3], 32768
        $region68: #{_autoencoder_forward_impl.1} parent=63 // pred_fallthru
          _
        %p357 = scmp.lt.s32.totalorder %s23, 1
        %s358 = scalar_select %p357, %s23, 1
        %s359 = smul.addr %s358, 8
        %s360 = scalar_lea.vmem %s0, %s359
        %p361 = pneg %p44
        %p362 = pneg %p41
        %p363 = pneg %p65
        %p364 = pneg %p62
        %p365 = pneg %p86
        %p366 = pneg %p83
        %p367 = pneg %p107
        %p368 = pneg %p104
        %p369 = pneg %p128
        %p370 = pneg %p125
        %p371 = pneg %p149
        %p372 = pneg %p146
        %p373 = pneg %p170
        %p374 = pneg %p167
        %p375 = pneg %p191
        %p376 = pneg %p188
        %p377 = pneg %p212
        %p378 = pneg %p209
        %p379 = pneg %p233
        %p380 = pneg %p230
        %p381 = pneg %p254
        %p382 = pneg %p251
        %p383 = pneg %p280
        %p384 = pneg %p277
        %p385 = scmp.lt.s32.totalorder %s23, 1
        %s386 = scalar_select %p385, %s23, 1
        %s387 = smul.addr %s386, 8
        %s388 = scalar_lea.vmem %s11, %s387
        %p389 = scmp.lt.s32.totalorder %s23, 1
        %s390 = scalar_select %p389, %s23, 1
        %s391 = smul.addr %s390, 8
        %s392 = scalar_lea.vmem %s0, %s391
        %p393 = scmp.lt.s32.totalorder %s23, 1
        %s394 = scalar_select %p393, %s23, 1
        %s395 = smul.addr %s394, 8
        %s396 = scalar_lea.vmem %s11, %s395
        %v397 = vld [vmem:[%s392] sm:$0xff]
        %v398 = vld [vmem:[%s1] sm:$0xff]
        %v399 = vld [vmem:[%s1 + $0x8] sm:$0xff]
        %v400 = vld [vmem:[%s2] sm:$0xf]
        %v402 = vlaneseq
        %v403 = vshrl.u32 %v402, 7
        %v404 = vsub.s32 0, %v403
        %v405 = vrot.slane %v400, %v404
        %v406 = vlaneseq
        %v407 = vshrl.u32 %v406, 7
        %v408 = vsub.s32 1, %v407
        %v409 = vrot.slane %v400, %v408
        %v410 = vlaneseq
        %v411 = vshrl.u32 %v410, 7
        %v412 = vsub.s32 2, %v411
        %v413 = vrot.slane %v400, %v412
        %v414 = vlaneseq
        %v415 = vshrl.u32 %v414, 7
        %v416 = vsub.s32 3, %v415
        %v417 = vrot.slane %v400, %v416
        %v424 = vcombine.high %v398, %v398
        %v425 = vcombine.high %v399, %v399
        %vm426 = vcmask 31744
        %v428 = vsel %vm426, %v397, 0
        %vm430 = vcmask 1043456
        %v431 = vsel %vm430, %v398, 0
        %v433 = vsel %vm430, %v424, 0
        %v435 = vsel %vm430, %v399, 0
        %v437 = vsel %vm430, %v425, 0
        %439 = vmatprep.subr.mxu0 %v433
        %440 = vmatpush1.msra.mxu0 %v431
        %441 = vmatprep.subr.mxu0 0.0
        %442 = vmatpush1.msra.mxu0 0.0
        %443 = vmatprep.subr.mxu0 0.0
        %444 = vmatpush1.msra.mxu0 0.0
        %445 = vmatprep.subr.mxu0 0.0
        %446 = vmatpush1.msra.mxu0 0.0
        %447 = vmatprep.subr.mxu0 0.0
        %448 = vmatpush1.msra.mxu0 0.0
        %449 = vmatprep.subr.mxu0 0.0
        %450 = vmatpush1.msra.mxu0 0.0
        %451 = vmatprep.subr.mxu0 0.0
        %452 = vmatpush1.msra.mxu0 0.0
        %453 = vmatprep.subr.mxu0 0.0
        %454 = vmatpush1.msra.mxu0 0.0
        %455 = vmatprep.subr.mxu0 0.0
        %456 = vmatpush1.msra.mxu0 0.0
        %457 = vmatprep.subr.mxu0 0.0
        %458 = vmatpush1.msra.mxu0 0.0
        %459 = vmatprep.subr.mxu0 0.0
        %460 = vmatpush1.msra.mxu0 0.0
        %461 = vmatprep.subr.mxu0 0.0
        %462 = vmatpush1.msra.mxu0 0.0
        %463 = vmatprep.subr.mxu0 0.0
        %464 = vmatpush1.msra.mxu0 0.0
        %465 = vmatprep.subr.mxu0 0.0
        %466 = vmatpush1.msra.mxu0 0.0
        %467 = vmatprep.subr.mxu0 0.0
        %468 = vmatpush1.msra.mxu0 0.0
        %469 = vmatprep.subr.mxu0 0.0
        %470 = vmatpush1.msra.mxu0 0.0
        %471 = vmatprep.subr.mxu0 0.0
        %472 = vmatpush1.msra.mxu0 0.0
        %473 = vmatprep.subr.mxu0 0.0
        %474 = vmatpush1.msra.mxu0 0.0
        %475 = vmatprep.subr.mxu0 0.0
        %476 = vmatpush1.msra.mxu0 0.0
        %477 = vmatprep.subr.mxu0 0.0
        %478 = vmatpush1.msra.mxu0 0.0
        %479 = vmatprep.subr.mxu0 0.0
        %480 = vmatpush1.msra.mxu0 0.0
        %481 = vmatprep.subr.mxu0 0.0
        %482 = vmatpush1.msra.mxu0 0.0
        %483 = vmatprep.subr.mxu0 0.0
        %484 = vmatpush1.msra.mxu0 0.0
        %485 = vmatprep.subr.mxu0 0.0
        %486 = vmatpush1.msra.mxu0 0.0
        %487 = vmatprep.subr.mxu0 0.0
        %488 = vmatpush1.msra.mxu0 0.0
        %489 = vmatprep.subr.mxu0 0.0
        %490 = vmatpush1.msra.mxu0 0.0
        %491 = vmatprep.subr.mxu0 0.0
        %492 = vmatpush1.msra.mxu0 0.0
        %493 = vmatprep.subr.mxu0 0.0
        %494 = vmatpush1.msra.mxu0 0.0
        %495 = vmatprep.subr.mxu0 0.0
        %496 = vmatpush1.msra.mxu0 0.0
        %497 = vmatprep.subr.mxu0 0.0
        %498 = vmatpush1.msra.mxu0 0.0
        %499 = vmatprep.subr.mxu0 0.0
        %500 = vmatpush1.msra.mxu0 0.0
        %501 = vmatprep.subr.mxu0 0.0
        %502 = vmatpush1.msra.mxu0 0.0
        %503 = vmatprep.mubr.f32.mxu0 0.0
        %504 = vmatmul.mubr.f32.gmra.mrb[0].mxu0 %v428
        %v505 = vpop.f32.mrb[0].mxu0
        %v506 = vadd.f32 %v405, %v505
        %v507 = vpop.f32.mrb[0].mxu0
        %v508 = vadd.f32 %v409, %v507
        %509 = vdwg.mxu0
        %510 = vmatprep.subr.mxu0 %v437
        %511 = vmatpush1.msra.mxu0 %v435
        %512 = vmatprep.subr.mxu0 0.0
        %513 = vmatpush1.msra.mxu0 0.0
        %514 = vmatprep.subr.mxu0 0.0
        %515 = vmatpush1.msra.mxu0 0.0
        %516 = vmatprep.subr.mxu0 0.0
        %517 = vmatpush1.msra.mxu0 0.0
        %518 = vmatprep.subr.mxu0 0.0
        %519 = vmatpush1.msra.mxu0 0.0
        %520 = vmatprep.subr.mxu0 0.0
        %521 = vmatpush1.msra.mxu0 0.0
        %522 = vmatprep.subr.mxu0 0.0
        %523 = vmatpush1.msra.mxu0 0.0
        %524 = vmatprep.subr.mxu0 0.0
        %525 = vmatpush1.msra.mxu0 0.0
        %526 = vmatprep.subr.mxu0 0.0
        %527 = vmatpush1.msra.mxu0 0.0
        %528 = vmatprep.subr.mxu0 0.0
        %529 = vmatpush1.msra.mxu0 0.0
        %530 = vmatprep.subr.mxu0 0.0
        %531 = vmatpush1.msra.mxu0 0.0
        %532 = vmatprep.subr.mxu0 0.0
        %533 = vmatpush1.msra.mxu0 0.0
        %534 = vmatprep.subr.mxu0 0.0
        %535 = vmatpush1.msra.mxu0 0.0
        %536 = vmatprep.subr.mxu0 0.0
        %537 = vmatpush1.msra.mxu0 0.0
        %538 = vmatprep.subr.mxu0 0.0
        %539 = vmatpush1.msra.mxu0 0.0
        %540 = vmatprep.subr.mxu0 0.0
        %541 = vmatpush1.msra.mxu0 0.0
        %542 = vmatprep.subr.mxu0 0.0
        %543 = vmatpush1.msra.mxu0 0.0
        %544 = vmatprep.subr.mxu0 0.0
        %545 = vmatpush1.msra.mxu0 0.0
        %546 = vmatprep.subr.mxu0 0.0
        %547 = vmatpush1.msra.mxu0 0.0
        %548 = vmatprep.subr.mxu0 0.0
        %549 = vmatpush1.msra.mxu0 0.0
        %550 = vmatprep.subr.mxu0 0.0
        %551 = vmatpush1.msra.mxu0 0.0
        %552 = vmatprep.subr.mxu0 0.0
        %553 = vmatpush1.msra.mxu0 0.0
        %554 = vmatprep.subr.mxu0 0.0
        %555 = vmatpush1.msra.mxu0 0.0
        %556 = vmatprep.subr.mxu0 0.0
        %557 = vmatpush1.msra.mxu0 0.0
        %558 = vmatprep.subr.mxu0 0.0
        %559 = vmatpush1.msra.mxu0 0.0
        %560 = vmatprep.subr.mxu0 0.0
        %561 = vmatpush1.msra.mxu0 0.0
        %562 = vmatprep.subr.mxu0 0.0
        %563 = vmatpush1.msra.mxu0 0.0
        %564 = vmatprep.subr.mxu0 0.0
        %565 = vmatpush1.msra.mxu0 0.0
        %566 = vmatprep.subr.mxu0 0.0
        %567 = vmatpush1.msra.mxu0 0.0
        %568 = vmatprep.subr.mxu0 0.0
        %569 = vmatpush1.msra.mxu0 0.0
        %570 = vmatprep.subr.mxu0 0.0
        %571 = vmatpush1.msra.mxu0 0.0
        %572 = vmatprep.subr.mxu0 0.0
        %573 = vmatpush1.msra.mxu0 0.0
        %574 = vmatprep.mubr.f32.mxu0 0.0
        %575 = vmatmul.mubr.f32.gmra.mrb[0].mxu0 %v428
        %v576 = vpop.f32.mrb[0].mxu0
        %v577 = vadd.f32 %v413, %v576
        %v578 = vpop.f32.mrb[0].mxu0
        %v579 = vadd.f32 %v417, %v578
        %580 = vdwg.mxu0
        %v581 = vtanh.pop %v506
        %v582 = vtanh.pop %v508
        %v583 = vtanh.pop %v577
        %v584 = vtanh.pop %v579
        %v585 = vld [vmem:[%s3] sm:$0xff]
        %v586 = vld [vmem:[%s3 + $0x8] sm:$0xff]
        %v587 = vld [vmem:[%s3 + $0x10] sm:$0xff]
        %v588 = vld [vmem:[%s3 + $0x18] sm:$0xff]
        %v589 = vld [vmem:[%s3 + $0x20] sm:$0xff]
        %v590 = vld [vmem:[%s3 + $0x28] sm:$0xff]
        %v591 = vld [vmem:[%s3 + $0x30] sm:$0xff]
        %v592 = vld [vmem:[%s3 + $0x38] sm:$0xff]
        %v593 = vld [vmem:[%s3 + $0x40] sm:$0xff]
        %v594 = vld [vmem:[%s3 + $0x48] sm:$0xff]
        %v595 = vld [vmem:[%s3 + $0x50] sm:$0xff]
        %v596 = vld [vmem:[%s3 + $0x58] sm:$0xff]
        %v597 = vld [vmem:[%s3 + $0x60] sm:$0xff]
        %v598 = vld [vmem:[%s3 + $0x68] sm:$0xff]
        %v599 = vld [vmem:[%s3 + $0x70] sm:$0xff]
        %v600 = vld [vmem:[%s3 + $0x78] sm:$0xff]
        %v601 = vld [vmem:[%s3 + $0x80] sm:$0xff]
        %v602 = vld [vmem:[%s3 + $0x88] sm:$0xff]
        %v603 = vld [vmem:[%s3 + $0x90] sm:$0xff]
        %v604 = vld [vmem:[%s3 + $0x98] sm:$0xff]
        %v605 = vld [vmem:[%s3 + $0xa0] sm:$0xff]
        %v606 = vld [vmem:[%s3 + $0xa8] sm:$0xff]
        %v607 = vld [vmem:[%s3 + $0xb0] sm:$0xff]
        %v608 = vld [vmem:[%s3 + $0xb8] sm:$0xff]
        %v609 = vld [vmem:[%s3 + $0xc0] sm:$0xff]
        %v610 = vld [vmem:[%s3 + $0xc8] sm:$0xff]
        %v611 = vld [vmem:[%s3 + $0xd0] sm:$0xff]
        %v612 = vld [vmem:[%s3 + $0xd8] sm:$0xff]
        %v613 = vld [vmem:[%s3 + $0xe0] sm:$0xff]
        %v614 = vld [vmem:[%s3 + $0xe8] sm:$0xff]
        %v615 = vld [vmem:[%s3 + $0xf0] sm:$0xff]
        %v616 = vld [vmem:[%s3 + $0xf8] sm:$0xff]
        %v617 = vld [vmem:[%s3 + $0x100] sm:$0xff]
        %v618 = vld [vmem:[%s3 + $0x108] sm:$0xff]
        %v619 = vld [vmem:[%s3 + $0x110] sm:$0xff]
        %v620 = vld [vmem:[%s3 + $0x118] sm:$0xff]
        %v621 = vld [vmem:[%s3 + $0x120] sm:$0xff]
        %v622 = vld [vmem:[%s3 + $0x128] sm:$0xff]
        %v623 = vld [vmem:[%s3 + $0x130] sm:$0xff]
        %v624 = vld [vmem:[%s3 + $0x138] sm:$0xff]
        %v625 = vld [vmem:[%s3 + $0x140] sm:$0xff]
        %v626 = vld [vmem:[%s3 + $0x148] sm:$0xff]
        %v627 = vld [vmem:[%s3 + $0x150] sm:$0xff]
        %v628 = vld [vmem:[%s3 + $0x158] sm:$0xff]
        %v629 = vld [vmem:[%s3 + $0x160] sm:$0xff]
        %v630 = vld [vmem:[%s3 + $0x168] sm:$0xff]
        %v631 = vld [vmem:[%s3 + $0x170] sm:$0xff]
        %v632 = vld [vmem:[%s3 + $0x178] sm:$0xff]
        %v633 = vld [vmem:[%s3 + $0x180] sm:$0xff]
        %v634 = vld [vmem:[%s3 + $0x188] sm:$0xff]
        %v635 = vld [vmem:[%s3 + $0x190] sm:$0xff]
        %v636 = vld [vmem:[%s3 + $0x198] sm:$0xff]
        %v637 = vld [vmem:[%s3 + $0x1a0] sm:$0xff]
        %v638 = vld [vmem:[%s3 + $0x1a8] sm:$0xff]
        %v639 = vld [vmem:[%s3 + $0x1b0] sm:$0xff]
        %v640 = vld [vmem:[%s3 + $0x1b8] sm:$0xff]
        %v641 = vld [vmem:[%s3 + $0x1c0] sm:$0xff]
        %v642 = vld [vmem:[%s3 + $0x1c8] sm:$0xff]
        %v643 = vld [vmem:[%s3 + $0x1d0] sm:$0xff]
        %v644 = vld [vmem:[%s3 + $0x1d8] sm:$0xff]
        %v645 = vld [vmem:[%s3 + $0x1e0] sm:$0xff]
        %v646 = vld [vmem:[%s3 + $0x1e8] sm:$0xff]
        %v647 = vld [vmem:[%s3 + $0x1f0] sm:$0xff]
        %v648 = vld [vmem:[%s3 + $0x1f8] sm:$0xff]
        %v649 = vld [vmem:[%s3 + $0x200] sm:$0xff]
        %v650 = vld [vmem:[%s3 + $0x208] sm:$0xff]
        %v651 = vld [vmem:[%s3 + $0x210] sm:$0xff]
        %v652 = vld [vmem:[%s3 + $0x218] sm:$0xff]
        %v653 = vld [vmem:[%s3 + $0x220] sm:$0xff]
        %v654 = vld [vmem:[%s3 + $0x228] sm:$0xff]
        %v655 = vld [vmem:[%s3 + $0x230] sm:$0xff]
        %v656 = vld [vmem:[%s3 + $0x238] sm:$0xff]
        %v657 = vld [vmem:[%s3 + $0x240] sm:$0xff]
        %v658 = vld [vmem:[%s3 + $0x248] sm:$0xff]
        %v659 = vld [vmem:[%s3 + $0x250] sm:$0xff]
        %v660 = vld [vmem:[%s3 + $0x258] sm:$0xff]
        %v661 = vld [vmem:[%s3 + $0x260] sm:$0xff]
        %v662 = vld [vmem:[%s3 + $0x268] sm:$0xff]
        %v663 = vld [vmem:[%s3 + $0x270] sm:$0xff]
        %v664 = vld [vmem:[%s3 + $0x278] sm:$0xff]
        %v665 = vld [vmem:[%s3 + $0x280] sm:$0xff]
        %v666 = vld [vmem:[%s3 + $0x288] sm:$0xff]
        %v667 = vld [vmem:[%s3 + $0x290] sm:$0xff]
        %v668 = vld [vmem:[%s3 + $0x298] sm:$0xff]
        %v669 = vld [vmem:[%s3 + $0x2a0] sm:$0xff]
        %v670 = vld [vmem:[%s3 + $0x2a8] sm:$0xff]
        %v671 = vld [vmem:[%s3 + $0x2b0] sm:$0xff]
        %v672 = vld [vmem:[%s3 + $0x2b8] sm:$0xff]
        %v673 = vld [vmem:[%s3 + $0x2c0] sm:$0xff]
        %v674 = vld [vmem:[%s3 + $0x2c8] sm:$0xff]
        %v675 = vld [vmem:[%s3 + $0x2d0] sm:$0xff]
        %v676 = vld [vmem:[%s3 + $0x2d8] sm:$0xff]
        %v677 = vld [vmem:[%s3 + $0x2e0] sm:$0xff]
        %v678 = vld [vmem:[%s3 + $0x2e8] sm:$0xff]
        %v679 = vld [vmem:[%s3 + $0x2f0] sm:$0xff]
        %v680 = vld [vmem:[%s3 + $0x2f8] sm:$0xff]
        %v681 = vld [vmem:[%s3 + $0x300] sm:$0xff]
        %v682 = vld [vmem:[%s3 + $0x308] sm:$0xff]
        %v683 = vld [vmem:[%s3 + $0x310] sm:$0xff]
        %v684 = vld [vmem:[%s3 + $0x318] sm:$0xff]
        %v685 = vld [vmem:[%s3 + $0x320] sm:$0xff]
        %v686 = vld [vmem:[%s3 + $0x328] sm:$0xff]
        %v687 = vld [vmem:[%s3 + $0x330] sm:$0xff]
        %v688 = vld [vmem:[%s3 + $0x338] sm:$0xff]
        %v689 = vld [vmem:[%s3 + $0x340] sm:$0xff]
        %v690 = vld [vmem:[%s3 + $0x348] sm:$0xff]
        %v691 = vld [vmem:[%s3 + $0x350] sm:$0xff]
        %v692 = vld [vmem:[%s3 + $0x358] sm:$0xff]
        %v693 = vld [vmem:[%s3 + $0x360] sm:$0xff]
        %v694 = vld [vmem:[%s3 + $0x368] sm:$0xff]
        %v695 = vld [vmem:[%s3 + $0x370] sm:$0xff]
        %v696 = vld [vmem:[%s3 + $0x378] sm:$0xff]
        %v697 = vld [vmem:[%s3 + $0x380] sm:$0xff]
        %v698 = vld [vmem:[%s3 + $0x388] sm:$0xff]
        %v699 = vld [vmem:[%s3 + $0x390] sm:$0xff]
        %v700 = vld [vmem:[%s3 + $0x398] sm:$0xff]
        %v701 = vld [vmem:[%s3 + $0x3a0] sm:$0xff]
        %v702 = vld [vmem:[%s3 + $0x3a8] sm:$0xff]
        %v703 = vld [vmem:[%s3 + $0x3b0] sm:$0xff]
        %v704 = vld [vmem:[%s3 + $0x3b8] sm:$0xff]
        %v705 = vld [vmem:[%s3 + $0x3c0] sm:$0xff]
        %v706 = vld [vmem:[%s3 + $0x3c8] sm:$0xff]
        %v707 = vld [vmem:[%s3 + $0x3d0] sm:$0xff]
        %v708 = vld [vmem:[%s3 + $0x3d8] sm:$0xff]
        %v709 = vld [vmem:[%s3 + $0x3e0] sm:$0xff]
        %v710 = vld [vmem:[%s3 + $0x3e8] sm:$0xff]
        %v711 = vld [vmem:[%s3 + $0x3f0] sm:$0xff]
        %v712 = vld [vmem:[%s3 + $0x3f8] sm:$0xff]
        %v713 = vld [vmem:[%s3 + $0x400] sm:$0xff]
        %v714 = vld [vmem:[%s3 + $0x408] sm:$0xff]
        %v715 = vld [vmem:[%s3 + $0x410] sm:$0xff]
        %v716 = vld [vmem:[%s3 + $0x418] sm:$0xff]
        %v717 = vld [vmem:[%s3 + $0x420] sm:$0xff]
        %v718 = vld [vmem:[%s3 + $0x428] sm:$0xff]
        %v719 = vld [vmem:[%s3 + $0x430] sm:$0xff]
        %v720 = vld [vmem:[%s3 + $0x438] sm:$0xff]
        %v721 = vld [vmem:[%s3 + $0x440] sm:$0xff]
        %v722 = vld [vmem:[%s3 + $0x448] sm:$0xff]
        %v723 = vld [vmem:[%s3 + $0x450] sm:$0xff]
        %v724 = vld [vmem:[%s3 + $0x458] sm:$0xff]
        %v725 = vld [vmem:[%s3 + $0x460] sm:$0xff]
        %v726 = vld [vmem:[%s3 + $0x468] sm:$0xff]
        %v727 = vld [vmem:[%s3 + $0x470] sm:$0xff]
        %v728 = vld [vmem:[%s3 + $0x478] sm:$0xff]
        %v729 = vld [vmem:[%s3 + $0x480] sm:$0xff]
        %v730 = vld [vmem:[%s3 + $0x488] sm:$0xff]
        %v731 = vld [vmem:[%s3 + $0x490] sm:$0xff]
        %v732 = vld [vmem:[%s3 + $0x498] sm:$0xff]
        %v733 = vld [vmem:[%s3 + $0x4a0] sm:$0xff]
        %v734 = vld [vmem:[%s3 + $0x4a8] sm:$0xff]
        %v735 = vld [vmem:[%s3 + $0x4b0] sm:$0xff]
        %v736 = vld [vmem:[%s3 + $0x4b8] sm:$0xff]
        %v737 = vld [vmem:[%s3 + $0x4c0] sm:$0xff]
        %v738 = vld [vmem:[%s3 + $0x4c8] sm:$0xff]
        %v739 = vld [vmem:[%s3 + $0x4d0] sm:$0xff]
        %v740 = vld [vmem:[%s3 + $0x4d8] sm:$0xff]
        %v741 = vld [vmem:[%s3 + $0x4e0] sm:$0xff]
        %v742 = vld [vmem:[%s3 + $0x4e8] sm:$0xff]
        %v743 = vld [vmem:[%s3 + $0x4f0] sm:$0xff]
        %v744 = vld [vmem:[%s3 + $0x4f8] sm:$0xff]
        %v745 = vld [vmem:[%s3 + $0x500] sm:$0xff]
        %v746 = vld [vmem:[%s3 + $0x508] sm:$0xff]
        %v747 = vld [vmem:[%s3 + $0x510] sm:$0xff]
        %v748 = vld [vmem:[%s3 + $0x518] sm:$0xff]
        %v749 = vld [vmem:[%s3 + $0x520] sm:$0xff]
        %v750 = vld [vmem:[%s3 + $0x528] sm:$0xff]
        %v751 = vld [vmem:[%s3 + $0x530] sm:$0xff]
        %v752 = vld [vmem:[%s3 + $0x538] sm:$0xff]
        %v753 = vld [vmem:[%s3 + $0x540] sm:$0xff]
        %v754 = vld [vmem:[%s3 + $0x548] sm:$0xff]
        %v755 = vld [vmem:[%s3 + $0x550] sm:$0xff]
        %v756 = vld [vmem:[%s3 + $0x558] sm:$0xff]
        %v757 = vld [vmem:[%s3 + $0x560] sm:$0xff]
        %v758 = vld [vmem:[%s3 + $0x568] sm:$0xff]
        %v759 = vld [vmem:[%s3 + $0x570] sm:$0xff]
        %v760 = vld [vmem:[%s3 + $0x578] sm:$0xff]
        %v761 = vld [vmem:[%s3 + $0x580] sm:$0xff]
        %v762 = vld [vmem:[%s3 + $0x588] sm:$0xff]
        %v763 = vld [vmem:[%s3 + $0x590] sm:$0xff]
        %v764 = vld [vmem:[%s3 + $0x598] sm:$0xff]
        %v765 = vld [vmem:[%s3 + $0x5a0] sm:$0xff]
        %v766 = vld [vmem:[%s3 + $0x5a8] sm:$0xff]
        %v767 = vld [vmem:[%s3 + $0x5b0] sm:$0xff]
        %v768 = vld [vmem:[%s3 + $0x5b8] sm:$0xff]
        %v769 = vld [vmem:[%s3 + $0x5c0] sm:$0xff]
        %v770 = vld [vmem:[%s3 + $0x5c8] sm:$0xff]
        %v771 = vld [vmem:[%s3 + $0x5d0] sm:$0xff]
        %v772 = vld [vmem:[%s3 + $0x5d8] sm:$0xff]
        %v773 = vld [vmem:[%s3 + $0x5e0] sm:$0xff]
        %v774 = vld [vmem:[%s3 + $0x5e8] sm:$0xff]
        %v775 = vld [vmem:[%s3 + $0x5f0] sm:$0xff]
        %v776 = vld [vmem:[%s3 + $0x5f8] sm:$0xff]
        %v777 = vld [vmem:[%s3 + $0x600] sm:$0xff]
        %v778 = vld [vmem:[%s3 + $0x608] sm:$0xff]
        %v779 = vld [vmem:[%s3 + $0x610] sm:$0xff]
        %v780 = vld [vmem:[%s3 + $0x618] sm:$0xff]
        %v781 = vld [vmem:[%s3 + $0x620] sm:$0xff]
        %v782 = vld [vmem:[%s3 + $0x628] sm:$0xff]
        %v783 = vld [vmem:[%s3 + $0x630] sm:$0xff]
        %v784 = vld [vmem:[%s3 + $0x638] sm:$0xff]
        %v785 = vld [vmem:[%s3 + $0x640] sm:$0xff]
        %v786 = vld [vmem:[%s3 + $0x648] sm:$0xff]
        %v787 = vld [vmem:[%s3 + $0x650] sm:$0xff]
        %v788 = vld [vmem:[%s3 + $0x658] sm:$0xff]
        %v789 = vld [vmem:[%s3 + $0x660] sm:$0xff]
        %v790 = vld [vmem:[%s3 + $0x668] sm:$0xff]
        %v791 = vld [vmem:[%s3 + $0x670] sm:$0xff]
        %v792 = vld [vmem:[%s3 + $0x678] sm:$0xff]
        %v793 = vld [vmem:[%s3 + $0x680] sm:$0xff]
        %v794 = vld [vmem:[%s3 + $0x688] sm:$0xff]
        %v795 = vld [vmem:[%s3 + $0x690] sm:$0xff]
        %v796 = vld [vmem:[%s3 + $0x698] sm:$0xff]
        %v797 = vld [vmem:[%s3 + $0x6a0] sm:$0xff]
        %v798 = vld [vmem:[%s3 + $0x6a8] sm:$0xff]
        %v799 = vld [vmem:[%s3 + $0x6b0] sm:$0xff]
        %v800 = vld [vmem:[%s3 + $0x6b8] sm:$0xff]
        %v801 = vld [vmem:[%s3 + $0x6c0] sm:$0xff]
        %v802 = vld [vmem:[%s3 + $0x6c8] sm:$0xff]
        %v803 = vld [vmem:[%s3 + $0x6d0] sm:$0xff]
        %v804 = vld [vmem:[%s3 + $0x6d8] sm:$0xff]
        %v805 = vld [vmem:[%s3 + $0x6e0] sm:$0xff]
        %v806 = vld [vmem:[%s3 + $0x6e8] sm:$0xff]
        %v807 = vld [vmem:[%s3 + $0x6f0] sm:$0xff]
        %v808 = vld [vmem:[%s3 + $0x6f8] sm:$0xff]
        %v809 = vld [vmem:[%s3 + $0x700] sm:$0xff]
        %v810 = vld [vmem:[%s3 + $0x708] sm:$0xff]
        %v811 = vld [vmem:[%s3 + $0x710] sm:$0xff]
        %v812 = vld [vmem:[%s3 + $0x718] sm:$0xff]
        %v813 = vld [vmem:[%s3 + $0x720] sm:$0xff]
        %v814 = vld [vmem:[%s3 + $0x728] sm:$0xff]
        %v815 = vld [vmem:[%s3 + $0x730] sm:$0xff]
        %v816 = vld [vmem:[%s3 + $0x738] sm:$0xff]
        %v817 = vld [vmem:[%s3 + $0x740] sm:$0xff]
        %v818 = vld [vmem:[%s3 + $0x748] sm:$0xff]
        %v819 = vld [vmem:[%s3 + $0x750] sm:$0xff]
        %v820 = vld [vmem:[%s3 + $0x758] sm:$0xff]
        %v821 = vld [vmem:[%s3 + $0x760] sm:$0xff]
        %v822 = vld [vmem:[%s3 + $0x768] sm:$0xff]
        %v823 = vld [vmem:[%s3 + $0x770] sm:$0xff]
        %v824 = vld [vmem:[%s3 + $0x778] sm:$0xff]
        %v825 = vld [vmem:[%s3 + $0x780] sm:$0xff]
        %v826 = vld [vmem:[%s3 + $0x788] sm:$0xff]
        %v827 = vld [vmem:[%s3 + $0x790] sm:$0xff]
        %v828 = vld [vmem:[%s3 + $0x798] sm:$0xff]
        %v829 = vld [vmem:[%s3 + $0x7a0] sm:$0xff]
        %v830 = vld [vmem:[%s3 + $0x7a8] sm:$0xff]
        %v831 = vld [vmem:[%s3 + $0x7b0] sm:$0xff]
        %v832 = vld [vmem:[%s3 + $0x7b8] sm:$0xff]
        %v833 = vld [vmem:[%s3 + $0x7c0] sm:$0xff]
        %v834 = vld [vmem:[%s3 + $0x7c8] sm:$0xff]
        %v835 = vld [vmem:[%s3 + $0x7d0] sm:$0xff]
        %v836 = vld [vmem:[%s3 + $0x7d8] sm:$0xff]
        %v837 = vld [vmem:[%s3 + $0x7e0] sm:$0xff]
        %v838 = vld [vmem:[%s3 + $0x7e8] sm:$0xff]
        %v839 = vld [vmem:[%s3 + $0x7f0] sm:$0xff]
        %v840 = vld [vmem:[%s3 + $0x7f8] sm:$0xff]
        %v841 = vld [vmem:[%s4] sm:$0xf]
        %v843 = vlaneseq
        %v844 = vshrl.u32 %v843, 7
        %v845 = vsub.s32 0, %v844
        %v846 = vrot.slane %v841, %v845
        %v847 = vlaneseq
        %v848 = vshrl.u32 %v847, 7
        %v849 = vsub.s32 1, %v848
        %v850 = vrot.slane %v841, %v849
        %v851 = vlaneseq
        %v852 = vshrl.u32 %v851, 7
        %v853 = vsub.s32 2, %v852
        %v854 = vrot.slane %v841, %v853
        %v855 = vlaneseq
        %v856 = vshrl.u32 %v855, 7
        %v857 = vsub.s32 3, %v856
        %v858 = vrot.slane %v841, %v857
        %863 = vmatprep.subr.mxu0 %v586
        %864 = vmatpush1.msra.mxu0 %v585
        %865 = vmatprep.subr.mxu0 %v590
        %866 = vmatpush1.msra.mxu0 %v589
        %867 = vmatprep.subr.mxu0 %v594
        %868 = vmatpush1.msra.mxu0 %v593
        %869 = vmatprep.subr.mxu0 %v598
        %870 = vmatpush1.msra.mxu0 %v597
        %871 = vmatprep.subr.mxu0 %v602
        %872 = vmatpush1.msra.mxu0 %v601
        %873 = vmatprep.subr.mxu0 %v606
        %874 = vmatpush1.msra.mxu0 %v605
        %875 = vmatprep.subr.mxu0 %v610
        %876 = vmatpush1.msra.mxu0 %v609
        %877 = vmatprep.subr.mxu0 %v614
        %878 = vmatpush1.msra.mxu0 %v613
        %879 = vmatprep.subr.mxu0 %v618
        %880 = vmatpush1.msra.mxu0 %v617
        %881 = vmatprep.subr.mxu0 %v622
        %882 = vmatpush1.msra.mxu0 %v621
        %883 = vmatprep.subr.mxu0 %v626
        %884 = vmatpush1.msra.mxu0 %v625
        %885 = vmatprep.subr.mxu0 %v630
        %886 = vmatpush1.msra.mxu0 %v629
        %887 = vmatprep.subr.mxu0 %v634
        %888 = vmatpush1.msra.mxu0 %v633
        %889 = vmatprep.subr.mxu0 %v638
        %890 = vmatpush1.msra.mxu0 %v637
        %891 = vmatprep.subr.mxu0 %v642
        %892 = vmatpush1.msra.mxu0 %v641
        %893 = vmatprep.subr.mxu0 %v646
        %894 = vmatpush1.msra.mxu0 %v645
        %895 = vmatprep.subr.mxu0 %v650
        %896 = vmatpush1.msra.mxu0 %v649
        %897 = vmatprep.subr.mxu0 %v654
        %898 = vmatpush1.msra.mxu0 %v653
        %899 = vmatprep.subr.mxu0 %v658
        %900 = vmatpush1.msra.mxu0 %v657
        %901 = vmatprep.subr.mxu0 %v662
        %902 = vmatpush1.msra.mxu0 %v661
        %903 = vmatprep.subr.mxu0 %v666
        %904 = vmatpush1.msra.mxu0 %v665
        %905 = vmatprep.subr.mxu0 %v670
        %906 = vmatpush1.msra.mxu0 %v669
        %907 = vmatprep.subr.mxu0 %v674
        %908 = vmatpush1.msra.mxu0 %v673
        %909 = vmatprep.subr.mxu0 %v678
        %910 = vmatpush1.msra.mxu0 %v677
        %911 = vmatprep.subr.mxu0 %v682
        %912 = vmatpush1.msra.mxu0 %v681
        %913 = vmatprep.subr.mxu0 %v686
        %914 = vmatpush1.msra.mxu0 %v685
        %915 = vmatprep.subr.mxu0 %v690
        %916 = vmatpush1.msra.mxu0 %v689
        %917 = vmatprep.subr.mxu0 %v694
        %918 = vmatpush1.msra.mxu0 %v693
        %919 = vmatprep.subr.mxu0 %v698
        %920 = vmatpush1.msra.mxu0 %v697
        %921 = vmatprep.subr.mxu0 %v702
        %922 = vmatpush1.msra.mxu0 %v701
        %923 = vmatprep.subr.mxu0 %v706
        %924 = vmatpush1.msra.mxu0 %v705
        %925 = vmatprep.subr.mxu0 %v710
        %926 = vmatpush1.msra.mxu0 %v709
        %927 = vmatprep.mubr.f32.mxu0 %v582
        %928 = vmatmul.mubr.f32.gmra.mrb[0].mxu0 %v581
        %v929 = vpop.f32.mrb[0].mxu0
        %v930 = vadd.f32 %v846, %v929
        %v931 = vpop.f32.mrb[0].mxu0
        %v932 = vadd.f32 %v850, %v931
        %933 = vdwg.mxu0
        %934 = vmatprep.subr.mxu0 %v714
        %935 = vmatpush1.msra.mxu0 %v713
        %936 = vmatprep.subr.mxu0 %v718
        %937 = vmatpush1.msra.mxu0 %v717
        %938 = vmatprep.subr.mxu0 %v722
        %939 = vmatpush1.msra.mxu0 %v721
        %940 = vmatprep.subr.mxu0 %v726
        %941 = vmatpush1.msra.mxu0 %v725
        %942 = vmatprep.subr.mxu0 %v730
        %943 = vmatpush1.msra.mxu0 %v729
        %944 = vmatprep.subr.mxu0 %v734
        %945 = vmatpush1.msra.mxu0 %v733
        %946 = vmatprep.subr.mxu0 %v738
        %947 = vmatpush1.msra.mxu0 %v737
        %948 = vmatprep.subr.mxu0 %v742
        %949 = vmatpush1.msra.mxu0 %v741
        %950 = vmatprep.subr.mxu0 %v746
        %951 = vmatpush1.msra.mxu0 %v745
        %952 = vmatprep.subr.mxu0 %v750
        %953 = vmatpush1.msra.mxu0 %v749
        %954 = vmatprep.subr.mxu0 %v754
        %955 = vmatpush1.msra.mxu0 %v753
        %956 = vmatprep.subr.mxu0 %v758
        %957 = vmatpush1.msra.mxu0 %v757
        %958 = vmatprep.subr.mxu0 %v762
        %959 = vmatpush1.msra.mxu0 %v761
        %960 = vmatprep.subr.mxu0 %v766
        %961 = vmatpush1.msra.mxu0 %v765
        %962 = vmatprep.subr.mxu0 %v770
        %963 = vmatpush1.msra.mxu0 %v769
        %964 = vmatprep.subr.mxu0 %v774
        %965 = vmatpush1.msra.mxu0 %v773
        %966 = vmatprep.subr.mxu0 %v778
        %967 = vmatpush1.msra.mxu0 %v777
        %968 = vmatprep.subr.mxu0 %v782
        %969 = vmatpush1.msra.mxu0 %v781
        %970 = vmatprep.subr.mxu0 %v786
        %971 = vmatpush1.msra.mxu0 %v785
        %972 = vmatprep.subr.mxu0 %v790
        %973 = vmatpush1.msra.mxu0 %v789
        %974 = vmatprep.subr.mxu0 %v794
        %975 = vmatpush1.msra.mxu0 %v793
        %976 = vmatprep.subr.mxu0 %v798
        %977 = vmatpush1.msra.mxu0 %v797
        %978 = vmatprep.subr.mxu0 %v802
        %979 = vmatpush1.msra.mxu0 %v801
        %980 = vmatprep.subr.mxu0 %v806
        %981 = vmatpush1.msra.mxu0 %v805
        %982 = vmatprep.subr.mxu0 %v810
        %983 = vmatpush1.msra.mxu0 %v809
        %984 = vmatprep.subr.mxu0 %v814
        %985 = vmatpush1.msra.mxu0 %v813
        %986 = vmatprep.subr.mxu0 %v818
        %987 = vmatpush1.msra.mxu0 %v817
        %988 = vmatprep.subr.mxu0 %v822
        %989 = vmatpush1.msra.mxu0 %v821
        %990 = vmatprep.subr.mxu0 %v826
        %991 = vmatpush1.msra.mxu0 %v825
        %992 = vmatprep.subr.mxu0 %v830
        %993 = vmatpush1.msra.mxu0 %v829
        %994 = vmatprep.subr.mxu0 %v834
        %995 = vmatpush1.msra.mxu0 %v833
        %996 = vmatprep.subr.mxu0 %v838
        %997 = vmatpush1.msra.mxu0 %v837
        %998 = vmatprep.mubr.f32.mxu0 %v584
        %999 = vmatmul.mubr.f32.gmra.mrb[0].mxu0 %v583
        %v1000 = vpop.f32.mrb[0].mxu0
        %v1001 = vadd.f32 %v930, %v1000
        %v1002 = vpop.f32.mrb[0].mxu0
        %v1003 = vadd.f32 %v932, %v1002
        %1004 = vdwg.mxu0
        %1005 = vmatprep.subr.mxu0 %v588
        %1006 = vmatpush1.msra.mxu0 %v587
        %1007 = vmatprep.subr.mxu0 %v592
        %1008 = vmatpush1.msra.mxu0 %v591
        %1009 = vmatprep.subr.mxu0 %v596
        %1010 = vmatpush1.msra.mxu0 %v595
        %1011 = vmatprep.subr.mxu0 %v600
        %1012 = vmatpush1.msra.mxu0 %v599
        %1013 = vmatprep.subr.mxu0 %v604
        %1014 = vmatpush1.msra.mxu0 %v603
        %1015 = vmatprep.subr.mxu0 %v608
        %1016 = vmatpush1.msra.mxu0 %v607
        %1017 = vmatprep.subr.mxu0 %v612
        %1018 = vmatpush1.msra.mxu0 %v611
        %1019 = vmatprep.subr.mxu0 %v616
        %1020 = vmatpush1.msra.mxu0 %v615
        %1021 = vmatprep.subr.mxu0 %v620
        %1022 = vmatpush1.msra.mxu0 %v619
        %1023 = vmatprep.subr.mxu0 %v624
        %1024 = vmatpush1.msra.mxu0 %v623
        %1025 = vmatprep.subr.mxu0 %v628
        %1026 = vmatpush1.msra.mxu0 %v627
        %1027 = vmatprep.subr.mxu0 %v632
        %1028 = vmatpush1.msra.mxu0 %v631
        %1029 = vmatprep.subr.mxu0 %v636
        %1030 = vmatpush1.msra.mxu0 %v635
        %1031 = vmatprep.subr.mxu0 %v640
        %1032 = vmatpush1.msra.mxu0 %v639
        %1033 = vmatprep.subr.mxu0 %v644
        %1034 = vmatpush1.msra.mxu0 %v643
        %1035 = vmatprep.subr.mxu0 %v648
        %1036 = vmatpush1.msra.mxu0 %v647
        %1037 = vmatprep.subr.mxu0 %v652
        %1038 = vmatpush1.msra.mxu0 %v651
        %1039 = vmatprep.subr.mxu0 %v656
        %1040 = vmatpush1.msra.mxu0 %v655
        %1041 = vmatprep.subr.mxu0 %v660
        %1042 = vmatpush1.msra.mxu0 %v659
        %1043 = vmatprep.subr.mxu0 %v664
        %1044 = vmatpush1.msra.mxu0 %v663
        %1045 = vmatprep.subr.mxu0 %v668
        %1046 = vmatpush1.msra.mxu0 %v667
        %1047 = vmatprep.subr.mxu0 %v672
        %1048 = vmatpush1.msra.mxu0 %v671
        %1049 = vmatprep.subr.mxu0 %v676
        %1050 = vmatpush1.msra.mxu0 %v675
        %1051 = vmatprep.subr.mxu0 %v680
        %1052 = vmatpush1.msra.mxu0 %v679
        %1053 = vmatprep.subr.mxu0 %v684
        %1054 = vmatpush1.msra.mxu0 %v683
        %1055 = vmatprep.subr.mxu0 %v688
        %1056 = vmatpush1.msra.mxu0 %v687
        %1057 = vmatprep.subr.mxu0 %v692
        %1058 = vmatpush1.msra.mxu0 %v691
        %1059 = vmatprep.subr.mxu0 %v696
        %1060 = vmatpush1.msra.mxu0 %v695
        %1061 = vmatprep.subr.mxu0 %v700
        %1062 = vmatpush1.msra.mxu0 %v699
        %1063 = vmatprep.subr.mxu0 %v704
        %1064 = vmatpush1.msra.mxu0 %v703
        %1065 = vmatprep.subr.mxu0 %v708
        %1066 = vmatpush1.msra.mxu0 %v707
        %1067 = vmatprep.subr.mxu0 %v712
        %1068 = vmatpush1.msra.mxu0 %v711
        %1069 = vmatprep.mubr.f32.mxu0 %v582
        %1070 = vmatmul.mubr.f32.gmra.mrb[0].mxu0 %v581
        %v1071 = vpop.f32.mrb[0].mxu0
        %v1072 = vadd.f32 %v854, %v1071
        %v1073 = vpop.f32.mrb[0].mxu0
        %v1074 = vadd.f32 %v858, %v1073
        %1075 = vdwg.mxu0
        %1076 = vmatprep.subr.mxu0 %v716
        %1077 = vmatpush1.msra.mxu0 %v715
        %1078 = vmatprep.subr.mxu0 %v720
        %1079 = vmatpush1.msra.mxu0 %v719
        %1080 = vmatprep.subr.mxu0 %v724
        %1081 = vmatpush1.msra.mxu0 %v723
        %1082 = vmatprep.subr.mxu0 %v728
        %1083 = vmatpush1.msra.mxu0 %v727
        %1084 = vmatprep.subr.mxu0 %v732
        %1085 = vmatpush1.msra.mxu0 %v731
        %1086 = vmatprep.subr.mxu0 %v736
        %1087 = vmatpush1.msra.mxu0 %v735
        %1088 = vmatprep.subr.mxu0 %v740
        %1089 = vmatpush1.msra.mxu0 %v739
        %1090 = vmatprep.subr.mxu0 %v744
        %1091 = vmatpush1.msra.mxu0 %v743
        %1092 = vmatprep.subr.mxu0 %v748
        %1093 = vmatpush1.msra.mxu0 %v747
        %1094 = vmatprep.subr.mxu0 %v752
        %1095 = vmatpush1.msra.mxu0 %v751
        %1096 = vmatprep.subr.mxu0 %v756
        %1097 = vmatpush1.msra.mxu0 %v755
        %1098 = vmatprep.subr.mxu0 %v760
        %1099 = vmatpush1.msra.mxu0 %v759
        %1100 = vmatprep.subr.mxu0 %v764
        %1101 = vmatpush1.msra.mxu0 %v763
        %1102 = vmatprep.subr.mxu0 %v768
        %1103 = vmatpush1.msra.mxu0 %v767
        %1104 = vmatprep.subr.mxu0 %v772
        %1105 = vmatpush1.msra.mxu0 %v771
        %1106 = vmatprep.subr.mxu0 %v776
        %1107 = vmatpush1.msra.mxu0 %v775
        %1108 = vmatprep.subr.mxu0 %v780
        %1109 = vmatpush1.msra.mxu0 %v779
        %1110 = vmatprep.subr.mxu0 %v784
        %1111 = vmatpush1.msra.mxu0 %v783
        %1112 = vmatprep.subr.mxu0 %v788
        %1113 = vmatpush1.msra.mxu0 %v787
        %1114 = vmatprep.subr.mxu0 %v792
        %1115 = vmatpush1.msra.mxu0 %v791
        %1116 = vmatprep.subr.mxu0 %v796
        %1117 = vmatpush1.msra.mxu0 %v795
        %1118 = vmatprep.subr.mxu0 %v800
        %1119 = vmatpush1.msra.mxu0 %v799
        %1120 = vmatprep.subr.mxu0 %v804
        %1121 = vmatpush1.msra.mxu0 %v803
        %1122 = vmatprep.subr.mxu0 %v808
        %1123 = vmatpush1.msra.mxu0 %v807
        %1124 = vmatprep.subr.mxu0 %v812
        %1125 = vmatpush1.msra.mxu0 %v811
        %1126 = vmatprep.subr.mxu0 %v816
        %1127 = vmatpush1.msra.mxu0 %v815
        %1128 = vmatprep.subr.mxu0 %v820
        %1129 = vmatpush1.msra.mxu0 %v819
        %1130 = vmatprep.subr.mxu0 %v824
        %1131 = vmatpush1.msra.mxu0 %v823
        %1132 = vmatprep.subr.mxu0 %v828
        %1133 = vmatpush1.msra.mxu0 %v827
        %1134 = vmatprep.subr.mxu0 %v832
        %1135 = vmatpush1.msra.mxu0 %v831
        %1136 = vmatprep.subr.mxu0 %v836
        %1137 = vmatpush1.msra.mxu0 %v835
        %1138 = vmatprep.subr.mxu0 %v840
        %1139 = vmatpush1.msra.mxu0 %v839
        %1140 = vmatprep.mubr.f32.mxu0 %v584
        %1141 = vmatmul.mubr.f32.gmra.mrb[0].mxu0 %v583
        %v1142 = vpop.f32.mrb[0].mxu0
        %v1143 = vadd.f32 %v1072, %v1142
        %v1144 = vpop.f32.mrb[0].mxu0
        %v1145 = vadd.f32 %v1074, %v1144
        %1146 = vdwg.mxu0
        %v1147 = vtanh.pop %v1001
        %v1148 = vtanh.pop %v1003
        %v1149 = vtanh.pop %v1143
        %v1150 = vtanh.pop %v1145
        %v1151 = vld [vmem:[%s5] sm:$0xff]
        %v1152 = vld [vmem:[%s5 + $0x8] sm:$0xff]
        %v1153 = vld [vmem:[%s5 + $0x10] sm:$0xff]
        %v1154 = vld [vmem:[%s5 + $0x18] sm:$0xff]
        %v1155 = vld [vmem:[%s5 + $0x20] sm:$0xff]
        %v1156 = vld [vmem:[%s5 + $0x28] sm:$0xff]
        %v1157 = vld [vmem:[%s5 + $0x30] sm:$0xff]
        %v1158 = vld [vmem:[%s5 + $0x38] sm:$0xff]
        %v1159 = vld [vmem:[%s5 + $0x40] sm:$0xff]
        %v1160 = vld [vmem:[%s5 + $0x48] sm:$0xff]
        %v1161 = vld [vmem:[%s5 + $0x50] sm:$0xff]
        %v1162 = vld [vmem:[%s5 + $0x58] sm:$0xff]
        %v1163 = vld [vmem:[%s5 + $0x60] sm:$0xff]
        %v1164 = vld [vmem:[%s5 + $0x68] sm:$0xff]
        %v1165 = vld [vmem:[%s5 + $0x70] sm:$0xff]
        %v1166 = vld [vmem:[%s5 + $0x78] sm:$0xff]
        %v1167 = vld [vmem:[%s5 + $0x80] sm:$0xff]
        %v1168 = vld [vmem:[%s5 + $0x88] sm:$0xff]
        %v1169 = vld [vmem:[%s5 + $0x90] sm:$0xff]
        %v1170 = vld [vmem:[%s5 + $0x98] sm:$0xff]
        %v1171 = vld [vmem:[%s5 + $0xa0] sm:$0xff]
        %v1172 = vld [vmem:[%s5 + $0xa8] sm:$0xff]
        %v1173 = vld [vmem:[%s5 + $0xb0] sm:$0xff]
        %v1174 = vld [vmem:[%s5 + $0xb8] sm:$0xff]
        %v1175 = vld [vmem:[%s5 + $0xc0] sm:$0xff]
        %v1176 = vld [vmem:[%s5 + $0xc8] sm:$0xff]
        %v1177 = vld [vmem:[%s5 + $0xd0] sm:$0xff]
        %v1178 = vld [vmem:[%s5 + $0xd8] sm:$0xff]
        %v1179 = vld [vmem:[%s5 + $0xe0] sm:$0xff]
        %v1180 = vld [vmem:[%s5 + $0xe8] sm:$0xff]
        %v1181 = vld [vmem:[%s5 + $0xf0] sm:$0xff]
        %v1182 = vld [vmem:[%s5 + $0xf8] sm:$0xff]
        %v1183 = vld [vmem:[%s5 + $0x100] sm:$0xff]
        %v1184 = vld [vmem:[%s5 + $0x108] sm:$0xff]
        %v1185 = vld [vmem:[%s5 + $0x110] sm:$0xff]
        %v1186 = vld [vmem:[%s5 + $0x118] sm:$0xff]
        %v1187 = vld [vmem:[%s5 + $0x120] sm:$0xff]
        %v1188 = vld [vmem:[%s5 + $0x128] sm:$0xff]
        %v1189 = vld [vmem:[%s5 + $0x130] sm:$0xff]
        %v1190 = vld [vmem:[%s5 + $0x138] sm:$0xff]
        %v1191 = vld [vmem:[%s5 + $0x140] sm:$0xff]
        %v1192 = vld [vmem:[%s5 + $0x148] sm:$0xff]
        %v1193 = vld [vmem:[%s5 + $0x150] sm:$0xff]
        %v1194 = vld [vmem:[%s5 + $0x158] sm:$0xff]
        %v1195 = vld [vmem:[%s5 + $0x160] sm:$0xff]
        %v1196 = vld [vmem:[%s5 + $0x168] sm:$0xff]
        %v1197 = vld [vmem:[%s5 + $0x170] sm:$0xff]
        %v1198 = vld [vmem:[%s5 + $0x178] sm:$0xff]
        %v1199 = vld [vmem:[%s5 + $0x180] sm:$0xff]
        %v1200 = vld [vmem:[%s5 + $0x188] sm:$0xff]
        %v1201 = vld [vmem:[%s5 + $0x190] sm:$0xff]
        %v1202 = vld [vmem:[%s5 + $0x198] sm:$0xff]
        %v1203 = vld [vmem:[%s5 + $0x1a0] sm:$0xff]
        %v1204 = vld [vmem:[%s5 + $0x1a8] sm:$0xff]
        %v1205 = vld [vmem:[%s5 + $0x1b0] sm:$0xff]
        %v1206 = vld [vmem:[%s5 + $0x1b8] sm:$0xff]
        %v1207 = vld [vmem:[%s5 + $0x1c0] sm:$0xff]
        %v1208 = vld [vmem:[%s5 + $0x1c8] sm:$0xff]
        %v1209 = vld [vmem:[%s5 + $0x1d0] sm:$0xff]
        %v1210 = vld [vmem:[%s5 + $0x1d8] sm:$0xff]
        %v1211 = vld [vmem:[%s5 + $0x1e0] sm:$0xff]
        %v1212 = vld [vmem:[%s5 + $0x1e8] sm:$0xff]
        %v1213 = vld [vmem:[%s5 + $0x1f0] sm:$0xff]
        %v1214 = vld [vmem:[%s5 + $0x1f8] sm:$0xff]
        %v1215 = vld [vmem:[%s5 + $0x200] sm:$0xff]
        %v1216 = vld [vmem:[%s5 + $0x208] sm:$0xff]
        %v1217 = vld [vmem:[%s5 + $0x210] sm:$0xff]
        %v1218 = vld [vmem:[%s5 + $0x218] sm:$0xff]
        %v1219 = vld [vmem:[%s5 + $0x220] sm:$0xff]
        %v1220 = vld [vmem:[%s5 + $0x228] sm:$0xff]
        %v1221 = vld [vmem:[%s5 + $0x230] sm:$0xff]
        %v1222 = vld [vmem:[%s5 + $0x238] sm:$0xff]
        %v1223 = vld [vmem:[%s5 + $0x240] sm:$0xff]
        %v1224 = vld [vmem:[%s5 + $0x248] sm:$0xff]
        %v1225 = vld [vmem:[%s5 + $0x250] sm:$0xff]
        %v1226 = vld [vmem:[%s5 + $0x258] sm:$0xff]
        %v1227 = vld [vmem:[%s5 + $0x260] sm:$0xff]
        %v1228 = vld [vmem:[%s5 + $0x268] sm:$0xff]
        %v1229 = vld [vmem:[%s5 + $0x270] sm:$0xff]
        %v1230 = vld [vmem:[%s5 + $0x278] sm:$0xff]
        %v1231 = vld [vmem:[%s5 + $0x280] sm:$0xff]
        %v1232 = vld [vmem:[%s5 + $0x288] sm:$0xff]
        %v1233 = vld [vmem:[%s5 + $0x290] sm:$0xff]
        %v1234 = vld [vmem:[%s5 + $0x298] sm:$0xff]
        %v1235 = vld [vmem:[%s5 + $0x2a0] sm:$0xff]
        %v1236 = vld [vmem:[%s5 + $0x2a8] sm:$0xff]
        %v1237 = vld [vmem:[%s5 + $0x2b0] sm:$0xff]
        %v1238 = vld [vmem:[%s5 + $0x2b8] sm:$0xff]
        %v1239 = vld [vmem:[%s5 + $0x2c0] sm:$0xff]
        %v1240 = vld [vmem:[%s5 + $0x2c8] sm:$0xff]
        %v1241 = vld [vmem:[%s5 + $0x2d0] sm:$0xff]
        %v1242 = vld [vmem:[%s5 + $0x2d8] sm:$0xff]
        %v1243 = vld [vmem:[%s5 + $0x2e0] sm:$0xff]
        %v1244 = vld [vmem:[%s5 + $0x2e8] sm:$0xff]
        %v1245 = vld [vmem:[%s5 + $0x2f0] sm:$0xff]
        %v1246 = vld [vmem:[%s5 + $0x2f8] sm:$0xff]
        %v1247 = vld [vmem:[%s5 + $0x300] sm:$0xff]
        %v1248 = vld [vmem:[%s5 + $0x308] sm:$0xff]
        %v1249 = vld [vmem:[%s5 + $0x310] sm:$0xff]
        %v1250 = vld [vmem:[%s5 + $0x318] sm:$0xff]
        %v1251 = vld [vmem:[%s5 + $0x320] sm:$0xff]
        %v1252 = vld [vmem:[%s5 + $0x328] sm:$0xff]
        %v1253 = vld [vmem:[%s5 + $0x330] sm:$0xff]
        %v1254 = vld [vmem:[%s5 + $0x338] sm:$0xff]
        %v1255 = vld [vmem:[%s5 + $0x340] sm:$0xff]
        %v1256 = vld [vmem:[%s5 + $0x348] sm:$0xff]
        %v1257 = vld [vmem:[%s5 + $0x350] sm:$0xff]
        %v1258 = vld [vmem:[%s5 + $0x358] sm:$0xff]
        %v1259 = vld [vmem:[%s5 + $0x360] sm:$0xff]
        %v1260 = vld [vmem:[%s5 + $0x368] sm:$0xff]
        %v1261 = vld [vmem:[%s5 + $0x370] sm:$0xff]
        %v1262 = vld [vmem:[%s5 + $0x378] sm:$0xff]
        %v1263 = vld [vmem:[%s5 + $0x380] sm:$0xff]
        %v1264 = vld [vmem:[%s5 + $0x388] sm:$0xff]
        %v1265 = vld [vmem:[%s5 + $0x390] sm:$0xff]
        %v1266 = vld [vmem:[%s5 + $0x398] sm:$0xff]
        %v1267 = vld [vmem:[%s5 + $0x3a0] sm:$0xff]
        %v1268 = vld [vmem:[%s5 + $0x3a8] sm:$0xff]
        %v1269 = vld [vmem:[%s5 + $0x3b0] sm:$0xff]
        %v1270 = vld [vmem:[%s5 + $0x3b8] sm:$0xff]
        %v1271 = vld [vmem:[%s5 + $0x3c0] sm:$0xff]
        %v1272 = vld [vmem:[%s5 + $0x3c8] sm:$0xff]
        %v1273 = vld [vmem:[%s5 + $0x3d0] sm:$0xff]
        %v1274 = vld [vmem:[%s5 + $0x3d8] sm:$0xff]
        %v1275 = vld [vmem:[%s5 + $0x3e0] sm:$0xff]
        %v1276 = vld [vmem:[%s5 + $0x3e8] sm:$0xff]
        %v1277 = vld [vmem:[%s5 + $0x3f0] sm:$0xff]
        %v1278 = vld [vmem:[%s5 + $0x3f8] sm:$0xff]
        %v1279 = vld [vmem:[%s5 + $0x400] sm:$0xff]
        %v1280 = vld [vmem:[%s5 + $0x408] sm:$0xff]
        %v1281 = vld [vmem:[%s5 + $0x410] sm:$0xff]
        %v1282 = vld [vmem:[%s5 + $0x418] sm:$0xff]
        %v1283 = vld [vmem:[%s5 + $0x420] sm:$0xff]
        %v1284 = vld [vmem:[%s5 + $0x428] sm:$0xff]
        %v1285 = vld [vmem:[%s5 + $0x430] sm:$0xff]
        %v1286 = vld [vmem:[%s5 + $0x438] sm:$0xff]
        %v1287 = vld [vmem:[%s5 + $0x440] sm:$0xff]
        %v1288 = vld [vmem:[%s5 + $0x448] sm:$0xff]
        %v1289 = vld [vmem:[%s5 + $0x450] sm:$0xff]
        %v1290 = vld [vmem:[%s5 + $0x458] sm:$0xff]
        %v1291 = vld [vmem:[%s5 + $0x460] sm:$0xff]
        %v1292 = vld [vmem:[%s5 + $0x468] sm:$0xff]
        %v1293 = vld [vmem:[%s5 + $0x470] sm:$0xff]
        %v1294 = vld [vmem:[%s5 + $0x478] sm:$0xff]
        %v1295 = vld [vmem:[%s5 + $0x480] sm:$0xff]
        %v1296 = vld [vmem:[%s5 + $0x488] sm:$0xff]
        %v1297 = vld [vmem:[%s5 + $0x490] sm:$0xff]
        %v1298 = vld [vmem:[%s5 + $0x498] sm:$0xff]
        %v1299 = vld [vmem:[%s5 + $0x4a0] sm:$0xff]
        %v1300 = vld [vmem:[%s5 + $0x4a8] sm:$0xff]
        %v1301 = vld [vmem:[%s5 + $0x4b0] sm:$0xff]
        %v1302 = vld [vmem:[%s5 + $0x4b8] sm:$0xff]
        %v1303 = vld [vmem:[%s5 + $0x4c0] sm:$0xff]
        %v1304 = vld [vmem:[%s5 + $0x4c8] sm:$0xff]
        %v1305 = vld [vmem:[%s5 + $0x4d0] sm:$0xff]
        %v1306 = vld [vmem:[%s5 + $0x4d8] sm:$0xff]
        %v1307 = vld [vmem:[%s5 + $0x4e0] sm:$0xff]
        %v1308 = vld [vmem:[%s5 + $0x4e8] sm:$0xff]
        %v1309 = vld [vmem:[%s5 + $0x4f0] sm:$0xff]
        %v1310 = vld [vmem:[%s5 + $0x4f8] sm:$0xff]
        %v1311 = vld [vmem:[%s5 + $0x500] sm:$0xff]
        %v1312 = vld [vmem:[%s5 + $0x508] sm:$0xff]
        %v1313 = vld [vmem:[%s5 + $0x510] sm:$0xff]
        %v1314 = vld [vmem:[%s5 + $0x518] sm:$0xff]
        %v1315 = vld [vmem:[%s5 + $0x520] sm:$0xff]
        %v1316 = vld [vmem:[%s5 + $0x528] sm:$0xff]
        %v1317 = vld [vmem:[%s5 + $0x530] sm:$0xff]
        %v1318 = vld [vmem:[%s5 + $0x538] sm:$0xff]
        %v1319 = vld [vmem:[%s5 + $0x540] sm:$0xff]
        %v1320 = vld [vmem:[%s5 + $0x548] sm:$0xff]
        %v1321 = vld [vmem:[%s5 + $0x550] sm:$0xff]
        %v1322 = vld [vmem:[%s5 + $0x558] sm:$0xff]
        %v1323 = vld [vmem:[%s5 + $0x560] sm:$0xff]
        %v1324 = vld [vmem:[%s5 + $0x568] sm:$0xff]
        %v1325 = vld [vmem:[%s5 + $0x570] sm:$0xff]
        %v1326 = vld [vmem:[%s5 + $0x578] sm:$0xff]
        %v1327 = vld [vmem:[%s5 + $0x580] sm:$0xff]
        %v1328 = vld [vmem:[%s5 + $0x588] sm:$0xff]
        %v1329 = vld [vmem:[%s5 + $0x590] sm:$0xff]
        %v1330 = vld [vmem:[%s5 + $0x598] sm:$0xff]
        %v1331 = vld [vmem:[%s5 + $0x5a0] sm:$0xff]
        %v1332 = vld [vmem:[%s5 + $0x5a8] sm:$0xff]
        %v1333 = vld [vmem:[%s5 + $0x5b0] sm:$0xff]
        %v1334 = vld [vmem:[%s5 + $0x5b8] sm:$0xff]
        %v1335 = vld [vmem:[%s5 + $0x5c0] sm:$0xff]
        %v1336 = vld [vmem:[%s5 + $0x5c8] sm:$0xff]
        %v1337 = vld [vmem:[%s5 + $0x5d0] sm:$0xff]
        %v1338 = vld [vmem:[%s5 + $0x5d8] sm:$0xff]
        %v1339 = vld [vmem:[%s5 + $0x5e0] sm:$0xff]
        %v1340 = vld [vmem:[%s5 + $0x5e8] sm:$0xff]
        %v1341 = vld [vmem:[%s5 + $0x5f0] sm:$0xff]
        %v1342 = vld [vmem:[%s5 + $0x5f8] sm:$0xff]
        %v1343 = vld [vmem:[%s5 + $0x600] sm:$0xff]
        %v1344 = vld [vmem:[%s5 + $0x608] sm:$0xff]
        %v1345 = vld [vmem:[%s5 + $0x610] sm:$0xff]
        %v1346 = vld [vmem:[%s5 + $0x618] sm:$0xff]
        %v1347 = vld [vmem:[%s5 + $0x620] sm:$0xff]
        %v1348 = vld [vmem:[%s5 + $0x628] sm:$0xff]
        %v1349 = vld [vmem:[%s5 + $0x630] sm:$0xff]
        %v1350 = vld [vmem:[%s5 + $0x638] sm:$0xff]
        %v1351 = vld [vmem:[%s5 + $0x640] sm:$0xff]
        %v1352 = vld [vmem:[%s5 + $0x648] sm:$0xff]
        %v1353 = vld [vmem:[%s5 + $0x650] sm:$0xff]
        %v1354 = vld [vmem:[%s5 + $0x658] sm:$0xff]
        %v1355 = vld [vmem:[%s5 + $0x660] sm:$0xff]
        %v1356 = vld [vmem:[%s5 + $0x668] sm:$0xff]
        %v1357 = vld [vmem:[%s5 + $0x670] sm:$0xff]
        %v1358 = vld [vmem:[%s5 + $0x678] sm:$0xff]
        %v1359 = vld [vmem:[%s5 + $0x680] sm:$0xff]
        %v1360 = vld [vmem:[%s5 + $0x688] sm:$0xff]
        %v1361 = vld [vmem:[%s5 + $0x690] sm:$0xff]
        %v1362 = vld [vmem:[%s5 + $0x698] sm:$0xff]
        %v1363 = vld [vmem:[%s5 + $0x6a0] sm:$0xff]
        %v1364 = vld [vmem:[%s5 + $0x6a8] sm:$0xff]
        %v1365 = vld [vmem:[%s5 + $0x6b0] sm:$0xff]
        %v1366 = vld [vmem:[%s5 + $0x6b8] sm:$0xff]
        %v1367 = vld [vmem:[%s5 + $0x6c0] sm:$0xff]
        %v1368 = vld [vmem:[%s5 + $0x6c8] sm:$0xff]
        %v1369 = vld [vmem:[%s5 + $0x6d0] sm:$0xff]
        %v1370 = vld [vmem:[%s5 + $0x6d8] sm:$0xff]
        %v1371 = vld [vmem:[%s5 + $0x6e0] sm:$0xff]
        %v1372 = vld [vmem:[%s5 + $0x6e8] sm:$0xff]
        %v1373 = vld [vmem:[%s5 + $0x6f0] sm:$0xff]
        %v1374 = vld [vmem:[%s5 + $0x6f8] sm:$0xff]
        %v1375 = vld [vmem:[%s5 + $0x700] sm:$0xff]
        %v1376 = vld [vmem:[%s5 + $0x708] sm:$0xff]
        %v1377 = vld [vmem:[%s5 + $0x710] sm:$0xff]
        %v1378 = vld [vmem:[%s5 + $0x718] sm:$0xff]
        %v1379 = vld [vmem:[%s5 + $0x720] sm:$0xff]
        %v1380 = vld [vmem:[%s5 + $0x728] sm:$0xff]
        %v1381 = vld [vmem:[%s5 + $0x730] sm:$0xff]
        %v1382 = vld [vmem:[%s5 + $0x738] sm:$0xff]
        %v1383 = vld [vmem:[%s5 + $0x740] sm:$0xff]
        %v1384 = vld [vmem:[%s5 + $0x748] sm:$0xff]
        %v1385 = vld [vmem:[%s5 + $0x750] sm:$0xff]
        %v1386 = vld [vmem:[%s5 + $0x758] sm:$0xff]
        %v1387 = vld [vmem:[%s5 + $0x760] sm:$0xff]
        %v1388 = vld [vmem:[%s5 + $0x768] sm:$0xff]
        %v1389 = vld [vmem:[%s5 + $0x770] sm:$0xff]
        %v1390 = vld [vmem:[%s5 + $0x778] sm:$0xff]
        %v1391 = vld [vmem:[%s5 + $0x780] sm:$0xff]
        %v1392 = vld [vmem:[%s5 + $0x788] sm:$0xff]
        %v1393 = vld [vmem:[%s5 + $0x790] sm:$0xff]
        %v1394 = vld [vmem:[%s5 + $0x798] sm:$0xff]
        %v1395 = vld [vmem:[%s5 + $0x7a0] sm:$0xff]
        %v1396 = vld [vmem:[%s5 + $0x7a8] sm:$0xff]
        %v1397 = vld [vmem:[%s5 + $0x7b0] sm:$0xff]
        %v1398 = vld [vmem:[%s5 + $0x7b8] sm:$0xff]
        %v1399 = vld [vmem:[%s5 + $0x7c0] sm:$0xff]
        %v1400 = vld [vmem:[%s5 + $0x7c8] sm:$0xff]
        %v1401 = vld [vmem:[%s5 + $0x7d0] sm:$0xff]
        %v1402 = vld [vmem:[%s5 + $0x7d8] sm:$0xff]
        %v1403 = vld [vmem:[%s5 + $0x7e0] sm:$0xff]
        %v1404 = vld [vmem:[%s5 + $0x7e8] sm:$0xff]
        %v1405 = vld [vmem:[%s5 + $0x7f0] sm:$0xff]
        %v1406 = vld [vmem:[%s5 + $0x7f8] sm:$0xff]
        %v1407 = vld [vmem:[%s6] sm:$0xf]
        %v1409 = vlaneseq
        %v1410 = vshrl.u32 %v1409, 7
        %v1411 = vsub.s32 0, %v1410
        %v1412 = vrot.slane %v1407, %v1411
        %v1413 = vlaneseq
        %v1414 = vshrl.u32 %v1413, 7
        %v1415 = vsub.s32 1, %v1414
        %v1416 = vrot.slane %v1407, %v1415
        %v1417 = vlaneseq
        %v1418 = vshrl.u32 %v1417, 7
        %v1419 = vsub.s32 2, %v1418
        %v1420 = vrot.slane %v1407, %v1419
        %v1421 = vlaneseq
        %v1422 = vshrl.u32 %v1421, 7
        %v1423 = vsub.s32 3, %v1422
        %v1424 = vrot.slane %v1407, %v1423
        %1429 = vmatprep.subr.mxu0 %v1152
        %1430 = vmatpush1.msra.mxu0 %v1151
        %1431 = vmatprep.subr.mxu0 %v1156
        %1432 = vmatpush1.msra.mxu0 %v1155
        %1433 = vmatprep.subr.mxu0 %v1160
        %1434 = vmatpush1.msra.mxu0 %v1159
        %1435 = vmatprep.subr.mxu0 %v1164
        %1436 = vmatpush1.msra.mxu0 %v1163
        %1437 = vmatprep.subr.mxu0 %v1168
        %1438 = vmatpush1.msra.mxu0 %v1167
        %1439 = vmatprep.subr.mxu0 %v1172
        %1440 = vmatpush1.msra.mxu0 %v1171
        %1441 = vmatprep.subr.mxu0 %v1176
        %1442 = vmatpush1.msra.mxu0 %v1175
        %1443 = vmatprep.subr.mxu0 %v1180
        %1444 = vmatpush1.msra.mxu0 %v1179
        %1445 = vmatprep.subr.mxu0 %v1184
        %1446 = vmatpush1.msra.mxu0 %v1183
        %1447 = vmatprep.subr.mxu0 %v1188
        %1448 = vmatpush1.msra.mxu0 %v1187
        %1449 = vmatprep.subr.mxu0 %v1192
        %1450 = vmatpush1.msra.mxu0 %v1191
        %1451 = vmatprep.subr.mxu0 %v1196
        %1452 = vmatpush1.msra.mxu0 %v1195
        %1453 = vmatprep.subr.mxu0 %v1200
        %1454 = vmatpush1.msra.mxu0 %v1199
        %1455 = vmatprep.subr.mxu0 %v1204
        %1456 = vmatpush1.msra.mxu0 %v1203
        %1457 = vmatprep.subr.mxu0 %v1208
        %1458 = vmatpush1.msra.mxu0 %v1207
        %1459 = vmatprep.subr.mxu0 %v1212
        %1460 = vmatpush1.msra.mxu0 %v1211
        %1461 = vmatprep.subr.mxu0 %v1216
        %1462 = vmatpush1.msra.mxu0 %v1215
        %1463 = vmatprep.subr.mxu0 %v1220
        %1464 = vmatpush1.msra.mxu0 %v1219
        %1465 = vmatprep.subr.mxu0 %v1224
        %1466 = vmatpush1.msra.mxu0 %v1223
        %1467 = vmatprep.subr.mxu0 %v1228
        %1468 = vmatpush1.msra.mxu0 %v1227
        %1469 = vmatprep.subr.mxu0 %v1232
        %1470 = vmatpush1.msra.mxu0 %v1231
        %1471 = vmatprep.subr.mxu0 %v1236
        %1472 = vmatpush1.msra.mxu0 %v1235
        %1473 = vmatprep.subr.mxu0 %v1240
        %1474 = vmatpush1.msra.mxu0 %v1239
        %1475 = vmatprep.subr.mxu0 %v1244
        %1476 = vmatpush1.msra.mxu0 %v1243
        %1477 = vmatprep.subr.mxu0 %v1248
        %1478 = vmatpush1.msra.mxu0 %v1247
        %1479 = vmatprep.subr.mxu0 %v1252
        %1480 = vmatpush1.msra.mxu0 %v1251
        %1481 = vmatprep.subr.mxu0 %v1256
        %1482 = vmatpush1.msra.mxu0 %v1255
        %1483 = vmatprep.subr.mxu0 %v1260
        %1484 = vmatpush1.msra.mxu0 %v1259
        %1485 = vmatprep.subr.mxu0 %v1264
        %1486 = vmatpush1.msra.mxu0 %v1263
        %1487 = vmatprep.subr.mxu0 %v1268
        %1488 = vmatpush1.msra.mxu0 %v1267
        %1489 = vmatprep.subr.mxu0 %v1272
        %1490 = vmatpush1.msra.mxu0 %v1271
        %1491 = vmatprep.subr.mxu0 %v1276
        %1492 = vmatpush1.msra.mxu0 %v1275
        %1493 = vmatprep.mubr.f32.mxu0 %v1148
        %1494 = vmatmul.mubr.f32.gmra.mrb[0].mxu0 %v1147
        %v1495 = vpop.f32.mrb[0].mxu0
        %v1496 = vadd.f32 %v1412, %v1495
        %v1497 = vpop.f32.mrb[0].mxu0
        %v1498 = vadd.f32 %v1416, %v1497
        %1499 = vdwg.mxu0
        %1500 = vmatprep.subr.mxu0 %v1280
        %1501 = vmatpush1.msra.mxu0 %v1279
        %1502 = vmatprep.subr.mxu0 %v1284
        %1503 = vmatpush1.msra.mxu0 %v1283
        %1504 = vmatprep.subr.mxu0 %v1288
        %1505 = vmatpush1.msra.mxu0 %v1287
        %1506 = vmatprep.subr.mxu0 %v1292
        %1507 = vmatpush1.msra.mxu0 %v1291
        %1508 = vmatprep.subr.mxu0 %v1296
        %1509 = vmatpush1.msra.mxu0 %v1295
        %1510 = vmatprep.subr.mxu0 %v1300
        %1511 = vmatpush1.msra.mxu0 %v1299
        %1512 = vmatprep.subr.mxu0 %v1304
        %1513 = vmatpush1.msra.mxu0 %v1303
        %1514 = vmatprep.subr.mxu0 %v1308
        %1515 = vmatpush1.msra.mxu0 %v1307
        %1516 = vmatprep.subr.mxu0 %v1312
        %1517 = vmatpush1.msra.mxu0 %v1311
        %1518 = vmatprep.subr.mxu0 %v1316
        %1519 = vmatpush1.msra.mxu0 %v1315
        %1520 = vmatprep.subr.mxu0 %v1320
        %1521 = vmatpush1.msra.mxu0 %v1319
        %1522 = vmatprep.subr.mxu0 %v1324
        %1523 = vmatpush1.msra.mxu0 %v1323
        %1524 = vmatprep.subr.mxu0 %v1328
        %1525 = vmatpush1.msra.mxu0 %v1327
        %1526 = vmatprep.subr.mxu0 %v1332
        %1527 = vmatpush1.msra.mxu0 %v1331
        %1528 = vmatprep.subr.mxu0 %v1336
        %1529 = vmatpush1.msra.mxu0 %v1335
        %1530 = vmatprep.subr.mxu0 %v1340
        %1531 = vmatpush1.msra.mxu0 %v1339
        %1532 = vmatprep.subr.mxu0 %v1344
        %1533 = vmatpush1.msra.mxu0 %v1343
        %1534 = vmatprep.subr.mxu0 %v1348
        %1535 = vmatpush1.msra.mxu0 %v1347
        %1536 = vmatprep.subr.mxu0 %v1352
        %1537 = vmatpush1.msra.mxu0 %v1351
        %1538 = vmatprep.subr.mxu0 %v1356
        %1539 = vmatpush1.msra.mxu0 %v1355
        %1540 = vmatprep.subr.mxu0 %v1360
        %1541 = vmatpush1.msra.mxu0 %v1359
        %1542 = vmatprep.subr.mxu0 %v1364
        %1543 = vmatpush1.msra.mxu0 %v1363
        %1544 = vmatprep.subr.mxu0 %v1368
        %1545 = vmatpush1.msra.mxu0 %v1367
        %1546 = vmatprep.subr.mxu0 %v1372
        %1547 = vmatpush1.msra.mxu0 %v1371
        %1548 = vmatprep.subr.mxu0 %v1376
        %1549 = vmatpush1.msra.mxu0 %v1375
        %1550 = vmatprep.subr.mxu0 %v1380
        %1551 = vmatpush1.msra.mxu0 %v1379
        %1552 = vmatprep.subr.mxu0 %v1384
        %1553 = vmatpush1.msra.mxu0 %v1383
        %1554 = vmatprep.subr.mxu0 %v1388
        %1555 = vmatpush1.msra.mxu0 %v1387
        %1556 = vmatprep.subr.mxu0 %v1392
        %1557 = vmatpush1.msra.mxu0 %v1391
        %1558 = vmatprep.subr.mxu0 %v1396
        %1559 = vmatpush1.msra.mxu0 %v1395
        %1560 = vmatprep.subr.mxu0 %v1400
        %1561 = vmatpush1.msra.mxu0 %v1399
        %1562 = vmatprep.subr.mxu0 %v1404
        %1563 = vmatpush1.msra.mxu0 %v1403
        %1564 = vmatprep.mubr.f32.mxu0 %v1150
        %1565 = vmatmul.mubr.f32.gmra.mrb[0].mxu0 %v1149
        %v1566 = vpop.f32.mrb[0].mxu0
        %v1567 = vadd.f32 %v1496, %v1566
        %v1568 = vpop.f32.mrb[0].mxu0
        %v1569 = vadd.f32 %v1498, %v1568
        %1570 = vdwg.mxu0
        %1571 = vmatprep.subr.mxu0 %v1154
        %1572 = vmatpush1.msra.mxu0 %v1153
        %1573 = vmatprep.subr.mxu0 %v1158
        %1574 = vmatpush1.msra.mxu0 %v1157
        %1575 = vmatprep.subr.mxu0 %v1162
        %1576 = vmatpush1.msra.mxu0 %v1161
        %1577 = vmatprep.subr.mxu0 %v1166
        %1578 = vmatpush1.msra.mxu0 %v1165
        %1579 = vmatprep.subr.mxu0 %v1170
        %1580 = vmatpush1.msra.mxu0 %v1169
        %1581 = vmatprep.subr.mxu0 %v1174
        %1582 = vmatpush1.msra.mxu0 %v1173
        %1583 = vmatprep.subr.mxu0 %v1178
        %1584 = vmatpush1.msra.mxu0 %v1177
        %1585 = vmatprep.subr.mxu0 %v1182
        %1586 = vmatpush1.msra.mxu0 %v1181
        %1587 = vmatprep.subr.mxu0 %v1186
        %1588 = vmatpush1.msra.mxu0 %v1185
        %1589 = vmatprep.subr.mxu0 %v1190
        %1590 = vmatpush1.msra.mxu0 %v1189
        %1591 = vmatprep.subr.mxu0 %v1194
        %1592 = vmatpush1.msra.mxu0 %v1193
        %1593 = vmatprep.subr.mxu0 %v1198
        %1594 = vmatpush1.msra.mxu0 %v1197
        %1595 = vmatprep.subr.mxu0 %v1202
        %1596 = vmatpush1.msra.mxu0 %v1201
        %1597 = vmatprep.subr.mxu0 %v1206
        %1598 = vmatpush1.msra.mxu0 %v1205
        %1599 = vmatprep.subr.mxu0 %v1210
        %1600 = vmatpush1.msra.mxu0 %v1209
        %1601 = vmatprep.subr.mxu0 %v1214
        %1602 = vmatpush1.msra.mxu0 %v1213
        %1603 = vmatprep.subr.mxu0 %v1218
        %1604 = vmatpush1.msra.mxu0 %v1217
        %1605 = vmatprep.subr.mxu0 %v1222
        %1606 = vmatpush1.msra.mxu0 %v1221
        %1607 = vmatprep.subr.mxu0 %v1226
        %1608 = vmatpush1.msra.mxu0 %v1225
        %1609 = vmatprep.subr.mxu0 %v1230
        %1610 = vmatpush1.msra.mxu0 %v1229
        %1611 = vmatprep.subr.mxu0 %v1234
        %1612 = vmatpush1.msra.mxu0 %v1233
        %1613 = vmatprep.subr.mxu0 %v1238
        %1614 = vmatpush1.msra.mxu0 %v1237
        %1615 = vmatprep.subr.mxu0 %v1242
        %1616 = vmatpush1.msra.mxu0 %v1241
        %1617 = vmatprep.subr.mxu0 %v1246
        %1618 = vmatpush1.msra.mxu0 %v1245
        %1619 = vmatprep.subr.mxu0 %v1250
        %1620 = vmatpush1.msra.mxu0 %v1249
        %1621 = vmatprep.subr.mxu0 %v1254
        %1622 = vmatpush1.msra.mxu0 %v1253
        %1623 = vmatprep.subr.mxu0 %v1258
        %1624 = vmatpush1.msra.mxu0 %v1257
        %1625 = vmatprep.subr.mxu0 %v1262
        %1626 = vmatpush1.msra.mxu0 %v1261
        %1627 = vmatprep.subr.mxu0 %v1266
        %1628 = vmatpush1.msra.mxu0 %v1265
        %1629 = vmatprep.subr.mxu0 %v1270
        %1630 = vmatpush1.msra.mxu0 %v1269
        %1631 = vmatprep.subr.mxu0 %v1274
        %1632 = vmatpush1.msra.mxu0 %v1273
        %1633 = vmatprep.subr.mxu0 %v1278
        %1634 = vmatpush1.msra.mxu0 %v1277
        %1635 = vmatprep.mubr.f32.mxu0 %v1148
        %1636 = vmatmul.mubr.f32.gmra.mrb[0].mxu0 %v1147
        %v1637 = vpop.f32.mrb[0].mxu0
        %v1638 = vadd.f32 %v1420, %v1637
        %v1639 = vpop.f32.mrb[0].mxu0
        %v1640 = vadd.f32 %v1424, %v1639
        %1641 = vdwg.mxu0
        %1642 = vmatprep.subr.mxu0 %v1282
        %1643 = vmatpush1.msra.mxu0 %v1281
        %1644 = vmatprep.subr.mxu0 %v1286
        %1645 = vmatpush1.msra.mxu0 %v1285
        %1646 = vmatprep.subr.mxu0 %v1290
        %1647 = vmatpush1.msra.mxu0 %v1289
        %1648 = vmatprep.subr.mxu0 %v1294
        %1649 = vmatpush1.msra.mxu0 %v1293
        %1650 = vmatprep.subr.mxu0 %v1298
        %1651 = vmatpush1.msra.mxu0 %v1297
        %1652 = vmatprep.subr.mxu0 %v1302
        %1653 = vmatpush1.msra.mxu0 %v1301
        %1654 = vmatprep.subr.mxu0 %v1306
        %1655 = vmatpush1.msra.mxu0 %v1305
        %1656 = vmatprep.subr.mxu0 %v1310
        %1657 = vmatpush1.msra.mxu0 %v1309
        %1658 = vmatprep.subr.mxu0 %v1314
        %1659 = vmatpush1.msra.mxu0 %v1313
        %1660 = vmatprep.subr.mxu0 %v1318
        %1661 = vmatpush1.msra.mxu0 %v1317
        %1662 = vmatprep.subr.mxu0 %v1322
        %1663 = vmatpush1.msra.mxu0 %v1321
        %1664 = vmatprep.subr.mxu0 %v1326
        %1665 = vmatpush1.msra.mxu0 %v1325
        %1666 = vmatprep.subr.mxu0 %v1330
        %1667 = vmatpush1.msra.mxu0 %v1329
        %1668 = vmatprep.subr.mxu0 %v1334
        %1669 = vmatpush1.msra.mxu0 %v1333
        %1670 = vmatprep.subr.mxu0 %v1338
        %1671 = vmatpush1.msra.mxu0 %v1337
        %1672 = vmatprep.subr.mxu0 %v1342
        %1673 = vmatpush1.msra.mxu0 %v1341
        %1674 = vmatprep.subr.mxu0 %v1346
        %1675 = vmatpush1.msra.mxu0 %v1345
        %1676 = vmatprep.subr.mxu0 %v1350
        %1677 = vmatpush1.msra.mxu0 %v1349
        %1678 = vmatprep.subr.mxu0 %v1354
        %1679 = vmatpush1.msra.mxu0 %v1353
        %1680 = vmatprep.subr.mxu0 %v1358
        %1681 = vmatpush1.msra.mxu0 %v1357
        %1682 = vmatprep.subr.mxu0 %v1362
        %1683 = vmatpush1.msra.mxu0 %v1361
        %1684 = vmatprep.subr.mxu0 %v1366
        %1685 = vmatpush1.msra.mxu0 %v1365
        %1686 = vmatprep.subr.mxu0 %v1370
        %1687 = vmatpush1.msra.mxu0 %v1369
        %1688 = vmatprep.subr.mxu0 %v1374
        %1689 = vmatpush1.msra.mxu0 %v1373
        %1690 = vmatprep.subr.mxu0 %v1378
        %1691 = vmatpush1.msra.mxu0 %v1377
        %1692 = vmatprep.subr.mxu0 %v1382
        %1693 = vmatpush1.msra.mxu0 %v1381
        %1694 = vmatprep.subr.mxu0 %v1386
        %1695 = vmatpush1.msra.mxu0 %v1385
        %1696 = vmatprep.subr.mxu0 %v1390
        %1697 = vmatpush1.msra.mxu0 %v1389
        %1698 = vmatprep.subr.mxu0 %v1394
        %1699 = vmatpush1.msra.mxu0 %v1393
        %1700 = vmatprep.subr.mxu0 %v1398
        %1701 = vmatpush1.msra.mxu0 %v1397
        %1702 = vmatprep.subr.mxu0 %v1402
        %1703 = vmatpush1.msra.mxu0 %v1401
        %1704 = vmatprep.subr.mxu0 %v1406
        %1705 = vmatpush1.msra.mxu0 %v1405
        %1706 = vmatprep.mubr.f32.mxu0 %v1150
        %1707 = vmatmul.mubr.f32.gmra.mrb[0].mxu0 %v1149
        %v1708 = vpop.f32.mrb[0].mxu0
        %v1709 = vadd.f32 %v1638, %v1708
        %v1710 = vpop.f32.mrb[0].mxu0
        %v1711 = vadd.f32 %v1640, %v1710
        %1712 = vdwg.mxu0
        %v1713 = vtanh.pop %v1567
        %v1714 = vtanh.pop %v1569
        %v1715 = vtanh.pop %v1709
        %v1716 = vtanh.pop %v1711
        %v1717 = vld [vmem:[#allocation2] sm:$0xff]
        %v1718 = vld [vmem:[#allocation2 + $0x8] sm:$0xff]
        %v1719 = vld [vmem:[#allocation2 + $0x10] sm:$0xff]
        %v1720 = vld [vmem:[#allocation2 + $0x18] sm:$0xff]
        %v1721 = vld [vmem:[#allocation2 + $0x20] sm:$0xff]
        %v1722 = vld [vmem:[#allocation2 + $0x28] sm:$0xff]
        %v1723 = vld [vmem:[#allocation2 + $0x30] sm:$0xff]
        %v1724 = vld [vmem:[#allocation2 + $0x38] sm:$0xff]
        %v1725 = vld [vmem:[#allocation2 + $0x40] sm:$0xff]
        %v1726 = vld [vmem:[#allocation2 + $0x48] sm:$0xff]
        %v1727 = vld [vmem:[#allocation2 + $0x50] sm:$0xff]
        %v1728 = vld [vmem:[#allocation2 + $0x58] sm:$0xff]
        %v1729 = vld [vmem:[#allocation2 + $0x60] sm:$0xff]
        %v1730 = vld [vmem:[#allocation2 + $0x68] sm:$0xff]
        %v1731 = vld [vmem:[#allocation2 + $0x70] sm:$0xff]
        %v1732 = vld [vmem:[#allocation2 + $0x78] sm:$0xff]
        %v1733 = vld [vmem:[#allocation2 + $0x80] sm:$0xff]
        %v1734 = vld [vmem:[#allocation2 + $0x88] sm:$0xff]
        %v1735 = vld [vmem:[#allocation2 + $0x90] sm:$0xff]
        %v1736 = vld [vmem:[#allocation2 + $0x98] sm:$0xff]
        %v1737 = vld [vmem:[#allocation2 + $0xa0] sm:$0xff]
        %v1738 = vld [vmem:[#allocation2 + $0xa8] sm:$0xff]
        %v1739 = vld [vmem:[#allocation2 + $0xb0] sm:$0xff]
        %v1740 = vld [vmem:[#allocation2 + $0xb8] sm:$0xff]
        %v1741 = vld [vmem:[#allocation2 + $0xc0] sm:$0xff]
        %v1742 = vld [vmem:[#allocation2 + $0xc8] sm:$0xff]
        %v1743 = vld [vmem:[#allocation2 + $0xd0] sm:$0xff]
        %v1744 = vld [vmem:[#allocation2 + $0xd8] sm:$0xff]
        %v1745 = vld [vmem:[#allocation2 + $0xe0] sm:$0xff]
        %v1746 = vld [vmem:[#allocation2 + $0xe8] sm:$0xff]
        %v1747 = vld [vmem:[#allocation2 + $0xf0] sm:$0xff]
        %v1748 = vld [vmem:[#allocation2 + $0xf8] sm:$0xff]
        %v1749 = vld [vmem:[#allocation2 + $0x100] sm:$0xff]
        %v1750 = vld [vmem:[#allocation2 + $0x108] sm:$0xff]
        %v1751 = vld [vmem:[#allocation2 + $0x110] sm:$0xff]
        %v1752 = vld [vmem:[#allocation2 + $0x118] sm:$0xff]
        %v1753 = vld [vmem:[#allocation2 + $0x120] sm:$0xff]
        %v1754 = vld [vmem:[#allocation2 + $0x128] sm:$0xff]
        %v1755 = vld [vmem:[#allocation2 + $0x130] sm:$0xff]
        %v1756 = vld [vmem:[#allocation2 + $0x138] sm:$0xff]
        %v1757 = vld [vmem:[#allocation2 + $0x140] sm:$0xff]
        %v1758 = vld [vmem:[#allocation2 + $0x148] sm:$0xff]
        %v1759 = vld [vmem:[#allocation2 + $0x150] sm:$0xff]
        %v1760 = vld [vmem:[#allocation2 + $0x158] sm:$0xff]
        %v1761 = vld [vmem:[#allocation2 + $0x160] sm:$0xff]
        %v1762 = vld [vmem:[#allocation2 + $0x168] sm:$0xff]
        %v1763 = vld [vmem:[#allocation2 + $0x170] sm:$0xff]
        %v1764 = vld [vmem:[#allocation2 + $0x178] sm:$0xff]
        %v1765 = vld [vmem:[#allocation2 + $0x180] sm:$0xff]
        %v1766 = vld [vmem:[#allocation2 + $0x188] sm:$0xff]
        %v1767 = vld [vmem:[#allocation2 + $0x190] sm:$0xff]
        %v1768 = vld [vmem:[#allocation2 + $0x198] sm:$0xff]
        %v1769 = vld [vmem:[#allocation2 + $0x1a0] sm:$0xff]
        %v1770 = vld [vmem:[#allocation2 + $0x1a8] sm:$0xff]
        %v1771 = vld [vmem:[#allocation2 + $0x1b0] sm:$0xff]
        %v1772 = vld [vmem:[#allocation2 + $0x1b8] sm:$0xff]
        %v1773 = vld [vmem:[#allocation2 + $0x1c0] sm:$0xff]
        %v1774 = vld [vmem:[#allocation2 + $0x1c8] sm:$0xff]
        %v1775 = vld [vmem:[#allocation2 + $0x1d0] sm:$0xff]
        %v1776 = vld [vmem:[#allocation2 + $0x1d8] sm:$0xff]
        %v1777 = vld [vmem:[#allocation2 + $0x1e0] sm:$0xff]
        %v1778 = vld [vmem:[#allocation2 + $0x1e8] sm:$0xff]
        %v1779 = vld [vmem:[#allocation2 + $0x1f0] sm:$0xff]
        %v1780 = vld [vmem:[#allocation2 + $0x1f8] sm:$0xff]
        %v1781 = vld [vmem:[#allocation2 + $0x200] sm:$0xff]
        %v1782 = vld [vmem:[#allocation2 + $0x208] sm:$0xff]
        %v1783 = vld [vmem:[#allocation2 + $0x210] sm:$0xff]
        %v1784 = vld [vmem:[#allocation2 + $0x218] sm:$0xff]
        %v1785 = vld [vmem:[#allocation2 + $0x220] sm:$0xff]
        %v1786 = vld [vmem:[#allocation2 + $0x228] sm:$0xff]
        %v1787 = vld [vmem:[#allocation2 + $0x230] sm:$0xff]
        %v1788 = vld [vmem:[#allocation2 + $0x238] sm:$0xff]
        %v1789 = vld [vmem:[#allocation2 + $0x240] sm:$0xff]
        %v1790 = vld [vmem:[#allocation2 + $0x248] sm:$0xff]
        %v1791 = vld [vmem:[#allocation2 + $0x250] sm:$0xff]
        %v1792 = vld [vmem:[#allocation2 + $0x258] sm:$0xff]
        %v1793 = vld [vmem:[#allocation2 + $0x260] sm:$0xff]
        %v1794 = vld [vmem:[#allocation2 + $0x268] sm:$0xff]
        %v1795 = vld [vmem:[#allocation2 + $0x270] sm:$0xff]
        %v1796 = vld [vmem:[#allocation2 + $0x278] sm:$0xff]
        %v1797 = vld [vmem:[#allocation2 + $0x280] sm:$0xff]
        %v1798 = vld [vmem:[#allocation2 + $0x288] sm:$0xff]
        %v1799 = vld [vmem:[#allocation2 + $0x290] sm:$0xff]
        %v1800 = vld [vmem:[#allocation2 + $0x298] sm:$0xff]
        %v1801 = vld [vmem:[#allocation2 + $0x2a0] sm:$0xff]
        %v1802 = vld [vmem:[#allocation2 + $0x2a8] sm:$0xff]
        %v1803 = vld [vmem:[#allocation2 + $0x2b0] sm:$0xff]
        %v1804 = vld [vmem:[#allocation2 + $0x2b8] sm:$0xff]
        %v1805 = vld [vmem:[#allocation2 + $0x2c0] sm:$0xff]
        %v1806 = vld [vmem:[#allocation2 + $0x2c8] sm:$0xff]
        %v1807 = vld [vmem:[#allocation2 + $0x2d0] sm:$0xff]
        %v1808 = vld [vmem:[#allocation2 + $0x2d8] sm:$0xff]
        %v1809 = vld [vmem:[#allocation2 + $0x2e0] sm:$0xff]
        %v1810 = vld [vmem:[#allocation2 + $0x2e8] sm:$0xff]
        %v1811 = vld [vmem:[#allocation2 + $0x2f0] sm:$0xff]
        %v1812 = vld [vmem:[#allocation2 + $0x2f8] sm:$0xff]
        %v1813 = vld [vmem:[#allocation2 + $0x300] sm:$0xff]
        %v1814 = vld [vmem:[#allocation2 + $0x308] sm:$0xff]
        %v1815 = vld [vmem:[#allocation2 + $0x310] sm:$0xff]
        %v1816 = vld [vmem:[#allocation2 + $0x318] sm:$0xff]
        %v1817 = vld [vmem:[#allocation2 + $0x320] sm:$0xff]
        %v1818 = vld [vmem:[#allocation2 + $0x328] sm:$0xff]
        %v1819 = vld [vmem:[#allocation2 + $0x330] sm:$0xff]
        %v1820 = vld [vmem:[#allocation2 + $0x338] sm:$0xff]
        %v1821 = vld [vmem:[#allocation2 + $0x340] sm:$0xff]
        %v1822 = vld [vmem:[#allocation2 + $0x348] sm:$0xff]
        %v1823 = vld [vmem:[#allocation2 + $0x350] sm:$0xff]
        %v1824 = vld [vmem:[#allocation2 + $0x358] sm:$0xff]
        %v1825 = vld [vmem:[#allocation2 + $0x360] sm:$0xff]
        %v1826 = vld [vmem:[#allocation2 + $0x368] sm:$0xff]
        %v1827 = vld [vmem:[#allocation2 + $0x370] sm:$0xff]
        %v1828 = vld [vmem:[#allocation2 + $0x378] sm:$0xff]
        %v1829 = vld [vmem:[#allocation2 + $0x380] sm:$0xff]
        %v1830 = vld [vmem:[#allocation2 + $0x388] sm:$0xff]
        %v1831 = vld [vmem:[#allocation2 + $0x390] sm:$0xff]
        %v1832 = vld [vmem:[#allocation2 + $0x398] sm:$0xff]
        %v1833 = vld [vmem:[#allocation2 + $0x3a0] sm:$0xff]
        %v1834 = vld [vmem:[#allocation2 + $0x3a8] sm:$0xff]
        %v1835 = vld [vmem:[#allocation2 + $0x3b0] sm:$0xff]
        %v1836 = vld [vmem:[#allocation2 + $0x3b8] sm:$0xff]
        %v1837 = vld [vmem:[#allocation2 + $0x3c0] sm:$0xff]
        %v1838 = vld [vmem:[#allocation2 + $0x3c8] sm:$0xff]
        %v1839 = vld [vmem:[#allocation2 + $0x3d0] sm:$0xff]
        %v1840 = vld [vmem:[#allocation2 + $0x3d8] sm:$0xff]
        %v1841 = vld [vmem:[#allocation2 + $0x3e0] sm:$0xff]
        %v1842 = vld [vmem:[#allocation2 + $0x3e8] sm:$0xff]
        %v1843 = vld [vmem:[#allocation2 + $0x3f0] sm:$0xff]
        %v1844 = vld [vmem:[#allocation2 + $0x3f8] sm:$0xff]
        %v1845 = vld [vmem:[#allocation2 + $0x400] sm:$0xff]
        %v1846 = vld [vmem:[#allocation2 + $0x408] sm:$0xff]
        %v1847 = vld [vmem:[#allocation2 + $0x410] sm:$0xff]
        %v1848 = vld [vmem:[#allocation2 + $0x418] sm:$0xff]
        %v1849 = vld [vmem:[#allocation2 + $0x420] sm:$0xff]
        %v1850 = vld [vmem:[#allocation2 + $0x428] sm:$0xff]
        %v1851 = vld [vmem:[#allocation2 + $0x430] sm:$0xff]
        %v1852 = vld [vmem:[#allocation2 + $0x438] sm:$0xff]
        %v1853 = vld [vmem:[#allocation2 + $0x440] sm:$0xff]
        %v1854 = vld [vmem:[#allocation2 + $0x448] sm:$0xff]
        %v1855 = vld [vmem:[#allocation2 + $0x450] sm:$0xff]
        %v1856 = vld [vmem:[#allocation2 + $0x458] sm:$0xff]
        %v1857 = vld [vmem:[#allocation2 + $0x460] sm:$0xff]
        %v1858 = vld [vmem:[#allocation2 + $0x468] sm:$0xff]
        %v1859 = vld [vmem:[#allocation2 + $0x470] sm:$0xff]
        %v1860 = vld [vmem:[#allocation2 + $0x478] sm:$0xff]
        %v1861 = vld [vmem:[#allocation2 + $0x480] sm:$0xff]
        %v1862 = vld [vmem:[#allocation2 + $0x488] sm:$0xff]
        %v1863 = vld [vmem:[#allocation2 + $0x490] sm:$0xff]
        %v1864 = vld [vmem:[#allocation2 + $0x498] sm:$0xff]
        %v1865 = vld [vmem:[#allocation2 + $0x4a0] sm:$0xff]
        %v1866 = vld [vmem:[#allocation2 + $0x4a8] sm:$0xff]
        %v1867 = vld [vmem:[#allocation2 + $0x4b0] sm:$0xff]
        %v1868 = vld [vmem:[#allocation2 + $0x4b8] sm:$0xff]
        %v1869 = vld [vmem:[#allocation2 + $0x4c0] sm:$0xff]
        %v1870 = vld [vmem:[#allocation2 + $0x4c8] sm:$0xff]
        %v1871 = vld [vmem:[#allocation2 + $0x4d0] sm:$0xff]
        %v1872 = vld [vmem:[#allocation2 + $0x4d8] sm:$0xff]
        %v1873 = vld [vmem:[#allocation2 + $0x4e0] sm:$0xff]
        %v1874 = vld [vmem:[#allocation2 + $0x4e8] sm:$0xff]
        %v1875 = vld [vmem:[#allocation2 + $0x4f0] sm:$0xff]
        %v1876 = vld [vmem:[#allocation2 + $0x4f8] sm:$0xff]
        %v1877 = vld [vmem:[#allocation2 + $0x500] sm:$0xff]
        %v1878 = vld [vmem:[#allocation2 + $0x508] sm:$0xff]
        %v1879 = vld [vmem:[#allocation2 + $0x510] sm:$0xff]
        %v1880 = vld [vmem:[#allocation2 + $0x518] sm:$0xff]
        %v1881 = vld [vmem:[#allocation2 + $0x520] sm:$0xff]
        %v1882 = vld [vmem:[#allocation2 + $0x528] sm:$0xff]
        %v1883 = vld [vmem:[#allocation2 + $0x530] sm:$0xff]
        %v1884 = vld [vmem:[#allocation2 + $0x538] sm:$0xff]
        %v1885 = vld [vmem:[#allocation2 + $0x540] sm:$0xff]
        %v1886 = vld [vmem:[#allocation2 + $0x548] sm:$0xff]
        %v1887 = vld [vmem:[#allocation2 + $0x550] sm:$0xff]
        %v1888 = vld [vmem:[#allocation2 + $0x558] sm:$0xff]
        %v1889 = vld [vmem:[#allocation2 + $0x560] sm:$0xff]
        %v1890 = vld [vmem:[#allocation2 + $0x568] sm:$0xff]
        %v1891 = vld [vmem:[#allocation2 + $0x570] sm:$0xff]
        %v1892 = vld [vmem:[#allocation2 + $0x578] sm:$0xff]
        %v1893 = vld [vmem:[#allocation2 + $0x580] sm:$0xff]
        %v1894 = vld [vmem:[#allocation2 + $0x588] sm:$0xff]
        %v1895 = vld [vmem:[#allocation2 + $0x590] sm:$0xff]
        %v1896 = vld [vmem:[#allocation2 + $0x598] sm:$0xff]
        %v1897 = vld [vmem:[#allocation2 + $0x5a0] sm:$0xff]
        %v1898 = vld [vmem:[#allocation2 + $0x5a8] sm:$0xff]
        %v1899 = vld [vmem:[#allocation2 + $0x5b0] sm:$0xff]
        %v1900 = vld [vmem:[#allocation2 + $0x5b8] sm:$0xff]
        %v1901 = vld [vmem:[#allocation2 + $0x5c0] sm:$0xff]
        %v1902 = vld [vmem:[#allocation2 + $0x5c8] sm:$0xff]
        %v1903 = vld [vmem:[#allocation2 + $0x5d0] sm:$0xff]
        %v1904 = vld [vmem:[#allocation2 + $0x5d8] sm:$0xff]
        %v1905 = vld [vmem:[#allocation2 + $0x5e0] sm:$0xff]
        %v1906 = vld [vmem:[#allocation2 + $0x5e8] sm:$0xff]
        %v1907 = vld [vmem:[#allocation2 + $0x5f0] sm:$0xff]
        %v1908 = vld [vmem:[#allocation2 + $0x5f8] sm:$0xff]
        %v1909 = vld [vmem:[#allocation2 + $0x600] sm:$0xff]
        %v1910 = vld [vmem:[#allocation2 + $0x608] sm:$0xff]
        %v1911 = vld [vmem:[#allocation2 + $0x610] sm:$0xff]
        %v1912 = vld [vmem:[#allocation2 + $0x618] sm:$0xff]
        %v1913 = vld [vmem:[#allocation2 + $0x620] sm:$0xff]
        %v1914 = vld [vmem:[#allocation2 + $0x628] sm:$0xff]
        %v1915 = vld [vmem:[#allocation2 + $0x630] sm:$0xff]
        %v1916 = vld [vmem:[#allocation2 + $0x638] sm:$0xff]
        %v1917 = vld [vmem:[#allocation2 + $0x640] sm:$0xff]
        %v1918 = vld [vmem:[#allocation2 + $0x648] sm:$0xff]
        %v1919 = vld [vmem:[#allocation2 + $0x650] sm:$0xff]
        %v1920 = vld [vmem:[#allocation2 + $0x658] sm:$0xff]
        %v1921 = vld [vmem:[#allocation2 + $0x660] sm:$0xff]
        %v1922 = vld [vmem:[#allocation2 + $0x668] sm:$0xff]
        %v1923 = vld [vmem:[#allocation2 + $0x670] sm:$0xff]
        %v1924 = vld [vmem:[#allocation2 + $0x678] sm:$0xff]
        %v1925 = vld [vmem:[#allocation2 + $0x680] sm:$0xff]
        %v1926 = vld [vmem:[#allocation2 + $0x688] sm:$0xff]
        %v1927 = vld [vmem:[#allocation2 + $0x690] sm:$0xff]
        %v1928 = vld [vmem:[#allocation2 + $0x698] sm:$0xff]
        %v1929 = vld [vmem:[#allocation2 + $0x6a0] sm:$0xff]
        %v1930 = vld [vmem:[#allocation2 + $0x6a8] sm:$0xff]
        %v1931 = vld [vmem:[#allocation2 + $0x6b0] sm:$0xff]
        %v1932 = vld [vmem:[#allocation2 + $0x6b8] sm:$0xff]
        %v1933 = vld [vmem:[#allocation2 + $0x6c0] sm:$0xff]
        %v1934 = vld [vmem:[#allocation2 + $0x6c8] sm:$0xff]
        %v1935 = vld [vmem:[#allocation2 + $0x6d0] sm:$0xff]
        %v1936 = vld [vmem:[#allocation2 + $0x6d8] sm:$0xff]
        %v1937 = vld [vmem:[#allocation2 + $0x6e0] sm:$0xff]
        %v1938 = vld [vmem:[#allocation2 + $0x6e8] sm:$0xff]
        %v1939 = vld [vmem:[#allocation2 + $0x6f0] sm:$0xff]
        %v1940 = vld [vmem:[#allocation2 + $0x6f8] sm:$0xff]
        %v1941 = vld [vmem:[#allocation2 + $0x700] sm:$0xff]
        %v1942 = vld [vmem:[#allocation2 + $0x708] sm:$0xff]
        %v1943 = vld [vmem:[#allocation2 + $0x710] sm:$0xff]
        %v1944 = vld [vmem:[#allocation2 + $0x718] sm:$0xff]
        %v1945 = vld [vmem:[#allocation2 + $0x720] sm:$0xff]
        %v1946 = vld [vmem:[#allocation2 + $0x728] sm:$0xff]
        %v1947 = vld [vmem:[#allocation2 + $0x730] sm:$0xff]
        %v1948 = vld [vmem:[#allocation2 + $0x738] sm:$0xff]
        %v1949 = vld [vmem:[#allocation2 + $0x740] sm:$0xff]
        %v1950 = vld [vmem:[#allocation2 + $0x748] sm:$0xff]
        %v1951 = vld [vmem:[#allocation2 + $0x750] sm:$0xff]
        %v1952 = vld [vmem:[#allocation2 + $0x758] sm:$0xff]
        %v1953 = vld [vmem:[#allocation2 + $0x760] sm:$0xff]
        %v1954 = vld [vmem:[#allocation2 + $0x768] sm:$0xff]
        %v1955 = vld [vmem:[#allocation2 + $0x770] sm:$0xff]
        %v1956 = vld [vmem:[#allocation2 + $0x778] sm:$0xff]
        %v1957 = vld [vmem:[#allocation2 + $0x780] sm:$0xff]
        %v1958 = vld [vmem:[#allocation2 + $0x788] sm:$0xff]
        %v1959 = vld [vmem:[#allocation2 + $0x790] sm:$0xff]
        %v1960 = vld [vmem:[#allocation2 + $0x798] sm:$0xff]
        %v1961 = vld [vmem:[#allocation2 + $0x7a0] sm:$0xff]
        %v1962 = vld [vmem:[#allocation2 + $0x7a8] sm:$0xff]
        %v1963 = vld [vmem:[#allocation2 + $0x7b0] sm:$0xff]
        %v1964 = vld [vmem:[#allocation2 + $0x7b8] sm:$0xff]
        %v1965 = vld [vmem:[#allocation2 + $0x7c0] sm:$0xff]
        %v1966 = vld [vmem:[#allocation2 + $0x7c8] sm:$0xff]
        %v1967 = vld [vmem:[#allocation2 + $0x7d0] sm:$0xff]
        %v1968 = vld [vmem:[#allocation2 + $0x7d8] sm:$0xff]
        %v1969 = vld [vmem:[#allocation2 + $0x7e0] sm:$0xff]
        %v1970 = vld [vmem:[#allocation2 + $0x7e8] sm:$0xff]
        %v1971 = vld [vmem:[#allocation2 + $0x7f0] sm:$0xff]
        %v1972 = vld [vmem:[#allocation2 + $0x7f8] sm:$0xff]
        %v1973 = vld [vmem:[%s8] sm:$0xf]
        %v1975 = vlaneseq
        %v1976 = vshrl.u32 %v1975, 7
        %v1977 = vsub.s32 0, %v1976
        %v1978 = vrot.slane %v1973, %v1977
        %v1979 = vlaneseq
        %v1980 = vshrl.u32 %v1979, 7
        %v1981 = vsub.s32 1, %v1980
        %v1982 = vrot.slane %v1973, %v1981
        %v1983 = vlaneseq
        %v1984 = vshrl.u32 %v1983, 7
        %v1985 = vsub.s32 2, %v1984
        %v1986 = vrot.slane %v1973, %v1985
        %v1987 = vlaneseq
        %v1988 = vshrl.u32 %v1987, 7
        %v1989 = vsub.s32 3, %v1988
        %v1990 = vrot.slane %v1973, %v1989
        %1995 = vmatprep.subr.mxu0 %v1718
        %1996 = vmatpush1.msra.mxu0 %v1717
        %1997 = vmatprep.subr.mxu0 %v1722
        %1998 = vmatpush1.msra.mxu0 %v1721
        %1999 = vmatprep.subr.mxu0 %v1726
        %2000 = vmatpush1.msra.mxu0 %v1725
        %2001 = vmatprep.subr.mxu0 %v1730
        %2002 = vmatpush1.msra.mxu0 %v1729
        %2003 = vmatprep.subr.mxu0 %v1734
        %2004 = vmatpush1.msra.mxu0 %v1733
        %2005 = vmatprep.subr.mxu0 %v1738
        %2006 = vmatpush1.msra.mxu0 %v1737
        %2007 = vmatprep.subr.mxu0 %v1742
        %2008 = vmatpush1.msra.mxu0 %v1741
        %2009 = vmatprep.subr.mxu0 %v1746
        %2010 = vmatpush1.msra.mxu0 %v1745
        %2011 = vmatprep.subr.mxu0 %v1750
        %2012 = vmatpush1.msra.mxu0 %v1749
        %2013 = vmatprep.subr.mxu0 %v1754
        %2014 = vmatpush1.msra.mxu0 %v1753
        %2015 = vmatprep.subr.mxu0 %v1758
        %2016 = vmatpush1.msra.mxu0 %v1757
        %2017 = vmatprep.subr.mxu0 %v1762
        %2018 = vmatpush1.msra.mxu0 %v1761
        %2019 = vmatprep.subr.mxu0 %v1766
        %2020 = vmatpush1.msra.mxu0 %v1765
        %2021 = vmatprep.subr.mxu0 %v1770
        %2022 = vmatpush1.msra.mxu0 %v1769
        %2023 = vmatprep.subr.mxu0 %v1774
        %2024 = vmatpush1.msra.mxu0 %v1773
        %2025 = vmatprep.subr.mxu0 %v1778
        %2026 = vmatpush1.msra.mxu0 %v1777
        %2027 = vmatprep.subr.mxu0 %v1782
        %2028 = vmatpush1.msra.mxu0 %v1781
        %2029 = vmatprep.subr.mxu0 %v1786
        %2030 = vmatpush1.msra.mxu0 %v1785
        %2031 = vmatprep.subr.mxu0 %v1790
        %2032 = vmatpush1.msra.mxu0 %v1789
        %2033 = vmatprep.subr.mxu0 %v1794
        %2034 = vmatpush1.msra.mxu0 %v1793
        %2035 = vmatprep.subr.mxu0 %v1798
        %2036 = vmatpush1.msra.mxu0 %v1797
        %2037 = vmatprep.subr.mxu0 %v1802
        %2038 = vmatpush1.msra.mxu0 %v1801
        %2039 = vmatprep.subr.mxu0 %v1806
        %2040 = vmatpush1.msra.mxu0 %v1805
        %2041 = vmatprep.subr.mxu0 %v1810
        %2042 = vmatpush1.msra.mxu0 %v1809
        %2043 = vmatprep.subr.mxu0 %v1814
        %2044 = vmatpush1.msra.mxu0 %v1813
        %2045 = vmatprep.subr.mxu0 %v1818
        %2046 = vmatpush1.msra.mxu0 %v1817
        %2047 = vmatprep.subr.mxu0 %v1822
        %2048 = vmatpush1.msra.mxu0 %v1821
        %2049 = vmatprep.subr.mxu0 %v1826
        %2050 = vmatpush1.msra.mxu0 %v1825
        %2051 = vmatprep.subr.mxu0 %v1830
        %2052 = vmatpush1.msra.mxu0 %v1829
        %2053 = vmatprep.subr.mxu0 %v1834
        %2054 = vmatpush1.msra.mxu0 %v1833
        %2055 = vmatprep.subr.mxu0 %v1838
        %2056 = vmatpush1.msra.mxu0 %v1837
        %2057 = vmatprep.subr.mxu0 %v1842
        %2058 = vmatpush1.msra.mxu0 %v1841
        %2059 = vmatprep.mubr.f32.mxu0 %v1714
        %2060 = vmatmul.mubr.f32.gmra.mrb[0].mxu0 %v1713
        %v2061 = vpop.f32.mrb[0].mxu0
        %v2062 = vadd.f32 %v1978, %v2061
        %v2063 = vpop.f32.mrb[0].mxu0
        %v2064 = vadd.f32 %v1982, %v2063
        %2065 = vdwg.mxu0
        %2066 = vmatprep.subr.mxu0 %v1846
        %2067 = vmatpush1.msra.mxu0 %v1845
        %2068 = vmatprep.subr.mxu0 %v1850
        %2069 = vmatpush1.msra.mxu0 %v1849
        %2070 = vmatprep.subr.mxu0 %v1854
        %2071 = vmatpush1.msra.mxu0 %v1853
        %2072 = vmatprep.subr.mxu0 %v1858
        %2073 = vmatpush1.msra.mxu0 %v1857
        %2074 = vmatprep.subr.mxu0 %v1862
        %2075 = vmatpush1.msra.mxu0 %v1861
        %2076 = vmatprep.subr.mxu0 %v1866
        %2077 = vmatpush1.msra.mxu0 %v1865
        %2078 = vmatprep.subr.mxu0 %v1870
        %2079 = vmatpush1.msra.mxu0 %v1869
        %2080 = vmatprep.subr.mxu0 %v1874
        %2081 = vmatpush1.msra.mxu0 %v1873
        %2082 = vmatprep.subr.mxu0 %v1878
        %2083 = vmatpush1.msra.mxu0 %v1877
        %2084 = vmatprep.subr.mxu0 %v1882
        %2085 = vmatpush1.msra.mxu0 %v1881
        %2086 = vmatprep.subr.mxu0 %v1886
        %2087 = vmatpush1.msra.mxu0 %v1885
        %2088 = vmatprep.subr.mxu0 %v1890
        %2089 = vmatpush1.msra.mxu0 %v1889
        %2090 = vmatprep.subr.mxu0 %v1894
        %2091 = vmatpush1.msra.mxu0 %v1893
        %2092 = vmatprep.subr.mxu0 %v1898
        %2093 = vmatpush1.msra.mxu0 %v1897
        %2094 = vmatprep.subr.mxu0 %v1902
        %2095 = vmatpush1.msra.mxu0 %v1901
        %2096 = vmatprep.subr.mxu0 %v1906
        %2097 = vmatpush1.msra.mxu0 %v1905
        %2098 = vmatprep.subr.mxu0 %v1910
        %2099 = vmatpush1.msra.mxu0 %v1909
        %2100 = vmatprep.subr.mxu0 %v1914
        %2101 = vmatpush1.msra.mxu0 %v1913
        %2102 = vmatprep.subr.mxu0 %v1918
        %2103 = vmatpush1.msra.mxu0 %v1917
        %2104 = vmatprep.subr.mxu0 %v1922
        %2105 = vmatpush1.msra.mxu0 %v1921
        %2106 = vmatprep.subr.mxu0 %v1926
        %2107 = vmatpush1.msra.mxu0 %v1925
        %2108 = vmatprep.subr.mxu0 %v1930
        %2109 = vmatpush1.msra.mxu0 %v1929
        %2110 = vmatprep.subr.mxu0 %v1934
        %2111 = vmatpush1.msra.mxu0 %v1933
        %2112 = vmatprep.subr.mxu0 %v1938
        %2113 = vmatpush1.msra.mxu0 %v1937
        %2114 = vmatprep.subr.mxu0 %v1942
        %2115 = vmatpush1.msra.mxu0 %v1941
        %2116 = vmatprep.subr.mxu0 %v1946
        %2117 = vmatpush1.msra.mxu0 %v1945
        %2118 = vmatprep.subr.mxu0 %v1950
        %2119 = vmatpush1.msra.mxu0 %v1949
        %2120 = vmatprep.subr.mxu0 %v1954
        %2121 = vmatpush1.msra.mxu0 %v1953
        %2122 = vmatprep.subr.mxu0 %v1958
        %2123 = vmatpush1.msra.mxu0 %v1957
        %2124 = vmatprep.subr.mxu0 %v1962
        %2125 = vmatpush1.msra.mxu0 %v1961
        %2126 = vmatprep.subr.mxu0 %v1966
        %2127 = vmatpush1.msra.mxu0 %v1965
        %2128 = vmatprep.subr.mxu0 %v1970
        %2129 = vmatpush1.msra.mxu0 %v1969
        %2130 = vmatprep.mubr.f32.mxu0 %v1716
        %2131 = vmatmul.mubr.f32.gmra.mrb[0].mxu0 %v1715
        %v2132 = vpop.f32.mrb[0].mxu0
        %v2133 = vadd.f32 %v2062, %v2132
        %v2134 = vpop.f32.mrb[0].mxu0
        %v2135 = vadd.f32 %v2064, %v2134
        %2136 = vdwg.mxu0
        %2137 = vmatprep.subr.mxu0 %v1720
        %2138 = vmatpush1.msra.mxu0 %v1719
        %2139 = vmatprep.subr.mxu0 %v1724
        %2140 = vmatpush1.msra.mxu0 %v1723
        %2141 = vmatprep.subr.mxu0 %v1728
        %2142 = vmatpush1.msra.mxu0 %v1727
        %2143 = vmatprep.subr.mxu0 %v1732
        %2144 = vmatpush1.msra.mxu0 %v1731
        %2145 = vmatprep.subr.mxu0 %v1736
        %2146 = vmatpush1.msra.mxu0 %v1735
        %2147 = vmatprep.subr.mxu0 %v1740
        %2148 = vmatpush1.msra.mxu0 %v1739
        %2149 = vmatprep.subr.mxu0 %v1744
        %2150 = vmatpush1.msra.mxu0 %v1743
        %2151 = vmatprep.subr.mxu0 %v1748
        %2152 = vmatpush1.msra.mxu0 %v1747
        %2153 = vmatprep.subr.mxu0 %v1752
        %2154 = vmatpush1.msra.mxu0 %v1751
        %2155 = vmatprep.subr.mxu0 %v1756
        %2156 = vmatpush1.msra.mxu0 %v1755
        %2157 = vmatprep.subr.mxu0 %v1760
        %2158 = vmatpush1.msra.mxu0 %v1759
        %2159 = vmatprep.subr.mxu0 %v1764
        %2160 = vmatpush1.msra.mxu0 %v1763
        %2161 = vmatprep.subr.mxu0 %v1768
        %2162 = vmatpush1.msra.mxu0 %v1767
        %2163 = vmatprep.subr.mxu0 %v1772
        %2164 = vmatpush1.msra.mxu0 %v1771
        %2165 = vmatprep.subr.mxu0 %v1776
        %2166 = vmatpush1.msra.mxu0 %v1775
        %2167 = vmatprep.subr.mxu0 %v1780
        %2168 = vmatpush1.msra.mxu0 %v1779
        %2169 = vmatprep.subr.mxu0 %v1784
        %2170 = vmatpush1.msra.mxu0 %v1783
        %2171 = vmatprep.subr.mxu0 %v1788
        %2172 = vmatpush1.msra.mxu0 %v1787
        %2173 = vmatprep.subr.mxu0 %v1792
        %2174 = vmatpush1.msra.mxu0 %v1791
        %2175 = vmatprep.subr.mxu0 %v1796
        %2176 = vmatpush1.msra.mxu0 %v1795
        %2177 = vmatprep.subr.mxu0 %v1800
        %2178 = vmatpush1.msra.mxu0 %v1799
        %2179 = vmatprep.subr.mxu0 %v1804
        %2180 = vmatpush1.msra.mxu0 %v1803
        %2181 = vmatprep.subr.mxu0 %v1808
        %2182 = vmatpush1.msra.mxu0 %v1807
        %2183 = vmatprep.subr.mxu0 %v1812
        %2184 = vmatpush1.msra.mxu0 %v1811
        %2185 = vmatprep.subr.mxu0 %v1816
        %2186 = vmatpush1.msra.mxu0 %v1815
        %2187 = vmatprep.subr.mxu0 %v1820
        %2188 = vmatpush1.msra.mxu0 %v1819
        %2189 = vmatprep.subr.mxu0 %v1824
        %2190 = vmatpush1.msra.mxu0 %v1823
        %2191 = vmatprep.subr.mxu0 %v1828
        %2192 = vmatpush1.msra.mxu0 %v1827
        %2193 = vmatprep.subr.mxu0 %v1832
        %2194 = vmatpush1.msra.mxu0 %v1831
        %2195 = vmatprep.subr.mxu0 %v1836
        %2196 = vmatpush1.msra.mxu0 %v1835
        %2197 = vmatprep.subr.mxu0 %v1840
        %2198 = vmatpush1.msra.mxu0 %v1839
        %2199 = vmatprep.subr.mxu0 %v1844
        %2200 = vmatpush1.msra.mxu0 %v1843
        %2201 = vmatprep.mubr.f32.mxu0 %v1714
        %2202 = vmatmul.mubr.f32.gmra.mrb[0].mxu0 %v1713
        %v2203 = vpop.f32.mrb[0].mxu0
        %v2204 = vadd.f32 %v1986, %v2203
        %v2205 = vpop.f32.mrb[0].mxu0
        %v2206 = vadd.f32 %v1990, %v2205
        %2207 = vdwg.mxu0
        %2208 = vmatprep.subr.mxu0 %v1848
        %2209 = vmatpush1.msra.mxu0 %v1847
        %2210 = vmatprep.subr.mxu0 %v1852
        %2211 = vmatpush1.msra.mxu0 %v1851
        %2212 = vmatprep.subr.mxu0 %v1856
        %2213 = vmatpush1.msra.mxu0 %v1855
        %2214 = vmatprep.subr.mxu0 %v1860
        %2215 = vmatpush1.msra.mxu0 %v1859
        %2216 = vmatprep.subr.mxu0 %v1864
        %2217 = vmatpush1.msra.mxu0 %v1863
        %2218 = vmatprep.subr.mxu0 %v1868
        %2219 = vmatpush1.msra.mxu0 %v1867
        %2220 = vmatprep.subr.mxu0 %v1872
        %2221 = vmatpush1.msra.mxu0 %v1871
        %2222 = vmatprep.subr.mxu0 %v1876
        %2223 = vmatpush1.msra.mxu0 %v1875
        %2224 = vmatprep.subr.mxu0 %v1880
        %2225 = vmatpush1.msra.mxu0 %v1879
        %2226 = vmatprep.subr.mxu0 %v1884
        %2227 = vmatpush1.msra.mxu0 %v1883
        %2228 = vmatprep.subr.mxu0 %v1888
        %2229 = vmatpush1.msra.mxu0 %v1887
        %2230 = vmatprep.subr.mxu0 %v1892
        %2231 = vmatpush1.msra.mxu0 %v1891
        %2232 = vmatprep.subr.mxu0 %v1896
        %2233 = vmatpush1.msra.mxu0 %v1895
        %2234 = vmatprep.subr.mxu0 %v1900
        %2235 = vmatpush1.msra.mxu0 %v1899
        %2236 = vmatprep.subr.mxu0 %v1904
        %2237 = vmatpush1.msra.mxu0 %v1903
        %2238 = vmatprep.subr.mxu0 %v1908
        %2239 = vmatpush1.msra.mxu0 %v1907
        %2240 = vmatprep.subr.mxu0 %v1912
        %2241 = vmatpush1.msra.mxu0 %v1911
        %2242 = vmatprep.subr.mxu0 %v1916
        %2243 = vmatpush1.msra.mxu0 %v1915
        %2244 = vmatprep.subr.mxu0 %v1920
        %2245 = vmatpush1.msra.mxu0 %v1919
        %2246 = vmatprep.subr.mxu0 %v1924
        %2247 = vmatpush1.msra.mxu0 %v1923
        %2248 = vmatprep.subr.mxu0 %v1928
        %2249 = vmatpush1.msra.mxu0 %v1927
        %2250 = vmatprep.subr.mxu0 %v1932
        %2251 = vmatpush1.msra.mxu0 %v1931
        %2252 = vmatprep.subr.mxu0 %v1936
        %2253 = vmatpush1.msra.mxu0 %v1935
        %2254 = vmatprep.subr.mxu0 %v1940
        %2255 = vmatpush1.msra.mxu0 %v1939
        %2256 = vmatprep.subr.mxu0 %v1944
        %2257 = vmatpush1.msra.mxu0 %v1943
        %2258 = vmatprep.subr.mxu0 %v1948
        %2259 = vmatpush1.msra.mxu0 %v1947
        %2260 = vmatprep.subr.mxu0 %v1952
        %2261 = vmatpush1.msra.mxu0 %v1951
        %2262 = vmatprep.subr.mxu0 %v1956
        %2263 = vmatpush1.msra.mxu0 %v1955
        %2264 = vmatprep.subr.mxu0 %v1960
        %2265 = vmatpush1.msra.mxu0 %v1959
        %2266 = vmatprep.subr.mxu0 %v1964
        %2267 = vmatpush1.msra.mxu0 %v1963
        %2268 = vmatprep.subr.mxu0 %v1968
        %2269 = vmatpush1.msra.mxu0 %v1967
        %2270 = vmatprep.subr.mxu0 %v1972
        %2271 = vmatpush1.msra.mxu0 %v1971
        %2272 = vmatprep.mubr.f32.mxu0 %v1716
        %2273 = vmatmul.mubr.f32.gmra.mrb[0].mxu0 %v1715
        %v2274 = vpop.f32.mrb[0].mxu0
        %v2275 = vadd.f32 %v2204, %v2274
        %v2276 = vpop.f32.mrb[0].mxu0
        %v2277 = vadd.f32 %v2206, %v2276
        %2278 = vdwg.mxu0
        %v2279 = vtanh.pop %v2133
        %v2280 = vtanh.pop %v2135
        %v2281 = vtanh.pop %v2275
        %v2282 = vtanh.pop %v2277
        %v2283 = vld [vmem:[%s9] sm:$0xff]
        %v2284 = vld [vmem:[%s9 + $0x8] sm:$0xff]
        %v2285 = vld [vmem:[%s9 + $0x10] sm:$0xff]
        %v2286 = vld [vmem:[%s9 + $0x18] sm:$0xff]
        %v2287 = vld [vmem:[%s9 + $0x20] sm:$0xff]
        %v2288 = vld [vmem:[%s9 + $0x28] sm:$0xff]
        %v2289 = vld [vmem:[%s9 + $0x30] sm:$0xff]
        %v2290 = vld [vmem:[%s9 + $0x38] sm:$0xff]
        %v2291 = vld [vmem:[%s9 + $0x40] sm:$0xff]
        %v2292 = vld [vmem:[%s9 + $0x48] sm:$0xff]
        %v2293 = vld [vmem:[%s9 + $0x50] sm:$0xff]
        %v2294 = vld [vmem:[%s9 + $0x58] sm:$0xff]
        %v2295 = vld [vmem:[%s9 + $0x60] sm:$0xff]
        %v2296 = vld [vmem:[%s9 + $0x68] sm:$0xff]
        %v2297 = vld [vmem:[%s9 + $0x70] sm:$0xff]
        %v2298 = vld [vmem:[%s9 + $0x78] sm:$0xff]
        %v2299 = vld [vmem:[%s9 + $0x80] sm:$0xff]
        %v2300 = vld [vmem:[%s9 + $0x88] sm:$0xff]
        %v2301 = vld [vmem:[%s9 + $0x90] sm:$0xff]
        %v2302 = vld [vmem:[%s9 + $0x98] sm:$0xff]
        %v2303 = vld [vmem:[%s9 + $0xa0] sm:$0xff]
        %v2304 = vld [vmem:[%s9 + $0xa8] sm:$0xff]
        %v2305 = vld [vmem:[%s9 + $0xb0] sm:$0xff]
        %v2306 = vld [vmem:[%s9 + $0xb8] sm:$0xff]
        %v2307 = vld [vmem:[%s9 + $0xc0] sm:$0xff]
        %v2308 = vld [vmem:[%s9 + $0xc8] sm:$0xff]
        %v2309 = vld [vmem:[%s9 + $0xd0] sm:$0xff]
        %v2310 = vld [vmem:[%s9 + $0xd8] sm:$0xff]
        %v2311 = vld [vmem:[%s9 + $0xe0] sm:$0xff]
        %v2312 = vld [vmem:[%s9 + $0xe8] sm:$0xff]
        %v2313 = vld [vmem:[%s9 + $0xf0] sm:$0xff]
        %v2314 = vld [vmem:[%s9 + $0xf8] sm:$0xff]
        %v2315 = vld [vmem:[%s9 + $0x100] sm:$0xff]
        %v2316 = vld [vmem:[%s9 + $0x108] sm:$0xff]
        %v2317 = vld [vmem:[%s9 + $0x110] sm:$0xff]
        %v2318 = vld [vmem:[%s9 + $0x118] sm:$0xff]
        %v2319 = vld [vmem:[%s9 + $0x120] sm:$0xff]
        %v2320 = vld [vmem:[%s9 + $0x128] sm:$0xff]
        %v2321 = vld [vmem:[%s9 + $0x130] sm:$0xff]
        %v2322 = vld [vmem:[%s9 + $0x138] sm:$0xff]
        %v2323 = vld [vmem:[%s9 + $0x140] sm:$0xff]
        %v2324 = vld [vmem:[%s9 + $0x148] sm:$0xff]
        %v2325 = vld [vmem:[%s9 + $0x150] sm:$0xff]
        %v2326 = vld [vmem:[%s9 + $0x158] sm:$0xff]
        %v2327 = vld [vmem:[%s9 + $0x160] sm:$0xff]
        %v2328 = vld [vmem:[%s9 + $0x168] sm:$0xff]
        %v2329 = vld [vmem:[%s9 + $0x170] sm:$0xff]
        %v2330 = vld [vmem:[%s9 + $0x178] sm:$0xff]
        %v2331 = vld [vmem:[%s9 + $0x180] sm:$0xff]
        %v2332 = vld [vmem:[%s9 + $0x188] sm:$0xff]
        %v2333 = vld [vmem:[%s9 + $0x190] sm:$0xff]
        %v2334 = vld [vmem:[%s9 + $0x198] sm:$0xff]
        %v2335 = vld [vmem:[%s9 + $0x1a0] sm:$0xff]
        %v2336 = vld [vmem:[%s9 + $0x1a8] sm:$0xff]
        %v2337 = vld [vmem:[%s9 + $0x1b0] sm:$0xff]
        %v2338 = vld [vmem:[%s9 + $0x1b8] sm:$0xff]
        %v2339 = vld [vmem:[%s9 + $0x1c0] sm:$0xff]
        %v2340 = vld [vmem:[%s9 + $0x1c8] sm:$0xff]
        %v2341 = vld [vmem:[%s9 + $0x1d0] sm:$0xff]
        %v2342 = vld [vmem:[%s9 + $0x1d8] sm:$0xff]
        %v2343 = vld [vmem:[%s9 + $0x1e0] sm:$0xff]
        %v2344 = vld [vmem:[%s9 + $0x1e8] sm:$0xff]
        %v2345 = vld [vmem:[%s9 + $0x1f0] sm:$0xff]
        %v2346 = vld [vmem:[%s9 + $0x1f8] sm:$0xff]
        %v2347 = vld [vmem:[%s10] sm:$0x1]
        %v2349 = vlaneseq
        %v2350 = vshrl.u32 %v2349, 7
        %v2351 = vsub.s32 0, %v2350
        %v2352 = vrot.slane %v2347, %v2351
        %2354 = vmatprep.subr.mxu0 0.0
        %2355 = vmatpush1.msra.mxu0 %v2283
        %2356 = vmatprep.subr.mxu0 0.0
        %2357 = vmatpush1.msra.mxu0 %v2284
        %2358 = vmatprep.subr.mxu0 0.0
        %2359 = vmatpush1.msra.mxu0 %v2285
        %2360 = vmatprep.subr.mxu0 0.0
        %2361 = vmatpush1.msra.mxu0 %v2286
        %2362 = vmatprep.subr.mxu0 0.0
        %2363 = vmatpush1.msra.mxu0 %v2287
        %2364 = vmatprep.subr.mxu0 0.0
        %2365 = vmatpush1.msra.mxu0 %v2288
        %2366 = vmatprep.subr.mxu0 0.0
        %2367 = vmatpush1.msra.mxu0 %v2289
        %2368 = vmatprep.subr.mxu0 0.0
        %2369 = vmatpush1.msra.mxu0 %v2290
        %2370 = vmatprep.subr.mxu0 0.0
        %2371 = vmatpush1.msra.mxu0 %v2291
        %2372 = vmatprep.subr.mxu0 0.0
        %2373 = vmatpush1.msra.mxu0 %v2292
        %2374 = vmatprep.subr.mxu0 0.0
        %2375 = vmatpush1.msra.mxu0 %v2293
        %2376 = vmatprep.subr.mxu0 0.0
        %2377 = vmatpush1.msra.mxu0 %v2294
        %2378 = vmatprep.subr.mxu0 0.0
        %2379 = vmatpush1.msra.mxu0 %v2295
        %2380 = vmatprep.subr.mxu0 0.0
        %2381 = vmatpush1.msra.mxu0 %v2296
        %2382 = vmatprep.subr.mxu0 0.0
        %2383 = vmatpush1.msra.mxu0 %v2297
        %2384 = vmatprep.subr.mxu0 0.0
        %2385 = vmatpush1.msra.mxu0 %v2298
        %2386 = vmatprep.subr.mxu0 0.0
        %2387 = vmatpush1.msra.mxu0 %v2299
        %2388 = vmatprep.subr.mxu0 0.0
        %2389 = vmatpush1.msra.mxu0 %v2300
        %2390 = vmatprep.subr.mxu0 0.0
        %2391 = vmatpush1.msra.mxu0 %v2301
        %2392 = vmatprep.subr.mxu0 0.0
        %2393 = vmatpush1.msra.mxu0 %v2302
        %2394 = vmatprep.subr.mxu0 0.0
        %2395 = vmatpush1.msra.mxu0 %v2303
        %2396 = vmatprep.subr.mxu0 0.0
        %2397 = vmatpush1.msra.mxu0 %v2304
        %2398 = vmatprep.subr.mxu0 0.0
        %2399 = vmatpush1.msra.mxu0 %v2305
        %2400 = vmatprep.subr.mxu0 0.0
        %2401 = vmatpush1.msra.mxu0 %v2306
        %2402 = vmatprep.subr.mxu0 0.0
        %2403 = vmatpush1.msra.mxu0 %v2307
        %2404 = vmatprep.subr.mxu0 0.0
        %2405 = vmatpush1.msra.mxu0 %v2308
        %2406 = vmatprep.subr.mxu0 0.0
        %2407 = vmatpush1.msra.mxu0 %v2309
        %2408 = vmatprep.subr.mxu0 0.0
        %2409 = vmatpush1.msra.mxu0 %v2310
        %2410 = vmatprep.subr.mxu0 0.0
        %2411 = vmatpush1.msra.mxu0 %v2311
        %2412 = vmatprep.subr.mxu0 0.0
        %2413 = vmatpush1.msra.mxu0 %v2312
        %2414 = vmatprep.subr.mxu0 0.0
        %2415 = vmatpush1.msra.mxu0 %v2313
        %2416 = vmatprep.subr.mxu0 0.0
        %2417 = vmatpush1.msra.mxu0 %v2314
        %2418 = vmatprep.mubr.f32.mxu0 %v2280
        %2419 = vmatmul.mubr.f32.gmra.mrb[0].mxu0 %v2279
        %v2420 = vpop.f32.mrb[0].mxu0
        %v2421 = vadd.f32 %v2352, %v2420
        %v2422 = vpop.f32.mrb[0].mxu0
        %2423 = vdwg.mxu0
        %2424 = vmatprep.subr.mxu0 0.0
        %2425 = vmatpush1.msra.mxu0 %v2315
        %2426 = vmatprep.subr.mxu0 0.0
        %2427 = vmatpush1.msra.mxu0 %v2316
        %2428 = vmatprep.subr.mxu0 0.0
        %2429 = vmatpush1.msra.mxu0 %v2317
        %2430 = vmatprep.subr.mxu0 0.0
        %2431 = vmatpush1.msra.mxu0 %v2318
        %2432 = vmatprep.subr.mxu0 0.0
        %2433 = vmatpush1.msra.mxu0 %v2319
        %2434 = vmatprep.subr.mxu0 0.0
        %2435 = vmatpush1.msra.mxu0 %v2320
        %2436 = vmatprep.subr.mxu0 0.0
        %2437 = vmatpush1.msra.mxu0 %v2321
        %2438 = vmatprep.subr.mxu0 0.0
        %2439 = vmatpush1.msra.mxu0 %v2322
        %2440 = vmatprep.subr.mxu0 0.0
        %2441 = vmatpush1.msra.mxu0 %v2323
        %2442 = vmatprep.subr.mxu0 0.0
        %2443 = vmatpush1.msra.mxu0 %v2324
        %2444 = vmatprep.subr.mxu0 0.0
        %2445 = vmatpush1.msra.mxu0 %v2325
        %2446 = vmatprep.subr.mxu0 0.0
        %2447 = vmatpush1.msra.mxu0 %v2326
        %2448 = vmatprep.subr.mxu0 0.0
        %2449 = vmatpush1.msra.mxu0 %v2327
        %2450 = vmatprep.subr.mxu0 0.0
        %2451 = vmatpush1.msra.mxu0 %v2328
        %2452 = vmatprep.subr.mxu0 0.0
        %2453 = vmatpush1.msra.mxu0 %v2329
        %2454 = vmatprep.subr.mxu0 0.0
        %2455 = vmatpush1.msra.mxu0 %v2330
        %2456 = vmatprep.subr.mxu0 0.0
        %2457 = vmatpush1.msra.mxu0 %v2331
        %2458 = vmatprep.subr.mxu0 0.0
        %2459 = vmatpush1.msra.mxu0 %v2332
        %2460 = vmatprep.subr.mxu0 0.0
        %2461 = vmatpush1.msra.mxu0 %v2333
        %2462 = vmatprep.subr.mxu0 0.0
        %2463 = vmatpush1.msra.mxu0 %v2334
        %2464 = vmatprep.subr.mxu0 0.0
        %2465 = vmatpush1.msra.mxu0 %v2335
        %2466 = vmatprep.subr.mxu0 0.0
        %2467 = vmatpush1.msra.mxu0 %v2336
        %2468 = vmatprep.subr.mxu0 0.0
        %2469 = vmatpush1.msra.mxu0 %v2337
        %2470 = vmatprep.subr.mxu0 0.0
        %2471 = vmatpush1.msra.mxu0 %v2338
        %2472 = vmatprep.subr.mxu0 0.0
        %2473 = vmatpush1.msra.mxu0 %v2339
        %2474 = vmatprep.subr.mxu0 0.0
        %2475 = vmatpush1.msra.mxu0 %v2340
        %2476 = vmatprep.subr.mxu0 0.0
        %2477 = vmatpush1.msra.mxu0 %v2341
        %2478 = vmatprep.subr.mxu0 0.0
        %2479 = vmatpush1.msra.mxu0 %v2342
        %2480 = vmatprep.subr.mxu0 0.0
        %2481 = vmatpush1.msra.mxu0 %v2343
        %2482 = vmatprep.subr.mxu0 0.0
        %2483 = vmatpush1.msra.mxu0 %v2344
        %2484 = vmatprep.subr.mxu0 0.0
        %2485 = vmatpush1.msra.mxu0 %v2345
        %2486 = vmatprep.subr.mxu0 0.0
        %2487 = vmatpush1.msra.mxu0 %v2346
        %2488 = vmatprep.mubr.f32.mxu0 %v2282
        %2489 = vmatmul.mubr.f32.gmra.mrb[0].mxu0 %v2281
        %v2490 = vpop.f32.mrb[0].mxu0
        %v2491 = vadd.f32 %v2421, %v2490
        %v2492 = vpop.f32.mrb[0].mxu0
        %2493 = vdwg.mxu0
        %2494 = vst [vmem:[%s396] sm:$0xff] %v2491
        %p2495 = scmp.lt.s32.totalorder %s23, 1
        %s2496 = scalar_select %p2495, %s23, 1
        %s2497 = smul.addr %s2496, 8
        %s2498 = scalar_lea.vmem %s11, %s2497
        // Predicated region
        $region69: #{_autoencoder_forward_impl.1} parent=63 // pred_check
          %p2499 = pneg %p277
        $region70: #{_autoencoder_forward_impl.1} parent=63 // pred_check_branch
          %2501 = sbr.rel (%p2499) target = $region72
        $region71: #{_autoencoder_forward_impl.1} parent=63 // pred_region
          _
        $region72: #{_autoencoder_forward_impl.1} parent=63 // pred_fallthru
          _
      $region64: #{_autoencoder_forward_impl.1} parent=5 // pred_fallthru
        _
      %p2502 = scmp.le.s32.totalorder 2, %s18
      // Predicated region
      $region73: #{_autoencoder_forward_impl.1} parent=5 // pred_check
        %p2503 = pneg %p2502
      $region74: #{_autoencoder_forward_impl.1} parent=5 // pred_check_branch
        %2505 = sbr.rel (%p2503) target = $region76
      $region75: #{_autoencoder_forward_impl.1} parent=5 // pred_region
        %s2506 = ssub.s32 %s18, 2
        // Predicated region
        $region77: #{_autoencoder_forward_impl.1} parent=75 // pred_check
          %p2507 = pneg %p283
        $region78: #{_autoencoder_forward_impl.1} parent=75 // pred_check_branch
          %2509 = sbr.rel (%p2507) target = $region80
        $region79: #{_autoencoder_forward_impl.1} parent=75 // pred_region
          %p2510 = scmp.lt.s32.totalorder %s24, 1
          %s2511 = scalar_select %p2510, %s24, 1
          %s2512 = smul.addr %s2511, 8
          %s2513 = scalar_lea.vmem %s11, %s2512
        $region80: #{_autoencoder_forward_impl.1} parent=75 // pred_fallthru
          _
      $region76: #{_autoencoder_forward_impl.1} parent=5 // pred_fallthru
        _
    $region6: #{_autoencoder_forward_impl.1} parent=1 // loop_footer
      %s22 = sadd.s32 1, %s18
    $region7: #{_autoencoder_forward_impl.1} parent=1 // loop_footer_branch
      %17 = sbr.rel target = $region3
    $region8: #{_autoencoder_forward_impl.1} parent=1 // loop_exit
      _
    %2514 = vsyncpa [#allocation3], 1
    %s2515 = scalar_lea.sflag [#allocation3], 1
    %2516 = vsyncpa %s2515, 1

</llo_original>
